<compile_context>
chip_gen: v5e
topology: v5e:2x2
jax: 0.10.0
libtpu: 0.0.40
codegen_flags: <defaults>
</compile_context>

<pallas_src>
import functools

import jax
import jax.numpy as jnp
from jax.experimental import pallas as pl
from jax.experimental.pallas import tpu as pltpu


def _deconv_kernel(x_ref, scale_ref, shift_ref, w_ref, out_ref, out_pad_ref,
                   *, H, W, Hout, Wout, K, p, Cout_p, matmul_dtype):
    """Fused eval-BN + ReLU + ConvTranspose2d(stride=1) for one batch block.

    x_ref       : (BB, H, W, Cin)          NHWC input block
    scale_ref   : (1, Cin)                 folded BN scale  = gamma / sqrt(var+eps)
    shift_ref   : (1, Cin)                 folded BN shift  = beta - mean * scale
    w_ref       : (Cin, K*K*Cout_p)        scatter-form weight, Cout padded to 128x
    out_ref     : (BB, Hout, Wout, Cout_p) lane-dense output block
    out_pad_ref : (BB, H+K-1, W+K-1, Cout_p) f32 VMEM accumulator
    """
    BB = x_ref.shape[0]
    Cin = x_ref.shape[-1]
    Hp = H + K - 1
    Wp = W + K - 1

    # BatchNorm (eval, folded) + ReLU in f32 (v5e VPU has no bf16 ALUs), then a
    # single cast at the MXU input.
    a = jnp.maximum(
        x_ref[...].astype(jnp.float32) * scale_ref[...] + shift_ref[...], 0.0)
    a2 = a.reshape(BB * H * W, Cin).astype(matmul_dtype)

    # ONE MXU matmul covering all K*K taps (scatter form of the transposed
    # conv): (BB*H*W, Cin) @ (Cin, K*K*Cout_p), f32 accumulation.
    y = jnp.dot(a2, w_ref[...], preferred_element_type=jnp.float32)

    # Zero only the halo strips of the padded accumulator; tap (0,0) fully
    # overwrites the [0:H, 0:W] interior, so no full-buffer memset is needed
    # and there is no cross-grid-step state.
    if K > 1:
        out_pad_ref[:, H:, :, :] = jnp.zeros((BB, K - 1, Wp, Cout_p), jnp.float32)
        out_pad_ref[:, :H, W:, :] = jnp.zeros((BB, H, K - 1, Cout_p), jnp.float32)

    # Scatter-accumulate the K*K shifted contributions.  Lane slices of y are
    # 128-aligned (Cout_p % 128 == 0) so they are free lane-tile selects.
    for t in range(K * K):
        i, j = t // K, t % K
        y_t = y[:, t * Cout_p:(t + 1) * Cout_p].reshape(BB, H, W, Cout_p)
        if t == 0:
            out_pad_ref[:, i:i + H, j:j + W, :] = y_t
        else:
            out_pad_ref[:, i:i + H, j:j + W, :] += y_t

    # Crop the transposed-conv padding and store (lane-dense Cout_p).
    out_ref[...] = out_pad_ref[:, p:p + Hout, p:p + Wout, :].astype(out_ref.dtype)


def deconv_nhwc(x_nhwc, params, kernel=3, stride=1, padding=None, eps=1e-5,
                batch_block=1, matmul_dtype=jnp.float32):
    """NHWC-native Pallas Deconv forward.  x_nhwc: (B, H, W, Cin) float32.

    Matches (eval mode): ConvTranspose2d(Cin, Cout, kernel, stride=1,
      padding=kernel//2 if padding is None else padding, bias=False)(
        ReLU(BatchNorm2d(Cin)(x)))
    Returns (B, Hout, Wout, Cout).
    """
    assert stride == 1, "only stride=1 (module default) is implemented"
    B, H, W, Cin = x_nhwc.shape
    p = kernel // 2 if padding is None else padding
    assert 0 <= p <= kernel - 1, "padding must be <= kernel-1 for stride=1"
    Hout = H + kernel - 1 - 2 * p
    Wout = W + kernel - 1 - 2 * p
    assert B % batch_block == 0, "batch_block must divide batch"
    BB = batch_block
    KK = kernel * kernel

    w = params["weight"]                       # (Cin, Cout, K, K) PyTorch layout
    Cout = w.shape[1]
    # Pad Cout to a lane-dense multiple of 128 (padded FLOPs are free on the
    # MXU; padded channels sliced off after the call).
    Cout_p = ((Cout + 127) // 128) * 128

    # Scatter-form weight: (Cin, Cout_p, K, K) -> (Cin, K, K, Cout_p)
    # -> (Cin, K*K*Cout_p); tap t = i*K + j owns columns [t*Cout_p:(t+1)*Cout_p].
    wp = jnp.pad(w.astype(matmul_dtype),
                 ((0, 0), (0, Cout_p - Cout), (0, 0), (0, 0)))
    wk = jnp.transpose(wp, (0, 2, 3, 1)).reshape(Cin, KK * Cout_p)

    # Fold eval-mode BatchNorm into per-channel scale/shift (kernel does 1 FMA).
    scale = params["gamma"] / jnp.sqrt(params["running_var"] + eps)
    shift = params["beta"] - params["running_mean"] * scale
    scale2 = scale.reshape(1, Cin).astype(jnp.float32)
    shift2 = shift.reshape(1, Cin).astype(jnp.float32)

    # Size the scoped VMEM limit from the actual buffers (default scoped limit
    # is 16/32 MiB on v5e/v6e which can be hit long before physical VMEM).
    m_bytes = jnp.dtype(matmul_dtype).itemsize
    est = (2 * BB * H * W * Cin * 4                              # x (dbl buf)
           + 2 * BB * Hout * Wout * Cout_p * 4                   # out (dbl buf)
           + 2 * Cin * KK * Cout_p * m_bytes                     # weight
           + BB * (H + kernel - 1) * (W + kernel - 1) * Cout_p * 4   # accumulator
           + BB * H * W * KK * Cout_p * 4                        # y temporary
           + 2 * BB * H * W * Cin * 4                            # activation temps
           + (1 << 20))
    vmem_limit = int(min(max(2 * est, 32 << 20), 48 << 20))

    out_padded = pl.pallas_call(
        functools.partial(_deconv_kernel, H=H, W=W, Hout=Hout, Wout=Wout,
                          K=kernel, p=p, Cout_p=Cout_p,
                          matmul_dtype=matmul_dtype),
        out_shape=jax.ShapeDtypeStruct((B, Hout, Wout, Cout_p), x_nhwc.dtype),
        grid=(B // BB,),
        in_specs=[
            pl.BlockSpec((BB, H, W, Cin), lambda b: (b, 0, 0, 0)),
            pl.BlockSpec((1, Cin), lambda b: (0, 0)),
            pl.BlockSpec((1, Cin), lambda b: (0, 0)),
            pl.BlockSpec((Cin, KK * Cout_p), lambda b: (0, 0)),
        ],
        out_specs=pl.BlockSpec((BB, Hout, Wout, Cout_p), lambda b: (b, 0, 0, 0)),
        scratch_shapes=[
            pltpu.VMEM((BB, H + kernel - 1, W + kernel - 1, Cout_p), jnp.float32),
        ],
        compiler_params=pltpu.CompilerParams(
            dimension_semantics=("parallel",),
            vmem_limit_bytes=vmem_limit),
    )(x_nhwc, scale2, shift2, wk)

    return out_padded[..., :Cout]


def deconv(x_nchw, params, kernel=3, stride=1, padding=None, eps=1e-5,
           batch_block=1, matmul_dtype=jnp.float32):
    """NCHW wrapper for PyTorch parity.  In an NHWC model use deconv_nhwc
    directly and drop these boundary transposes (they are pure HBM traffic)."""
    x = jnp.transpose(x_nchw, (0, 2, 3, 1))
    out = deconv_nhwc(x, params, kernel=kernel, stride=stride, padding=padding,
                      eps=eps, batch_block=batch_block, matmul_dtype=matmul_dtype)
    return jnp.transpose(out, (0, 3, 1, 2))


def deconv_reference(x_nchw, params, kernel=3, stride=1, padding=None, eps=1e-5):
    """Pure-JAX reference (scatter-form transposed conv) for verification."""
    assert stride == 1
    B, Cin, H, W = x_nchw.shape
    p = kernel // 2 if padding is None else padding
    w = params["weight"].astype(jnp.float32)   # (Cin, Cout, K, K)
    Cout = w.shape[1]

    scale = params["gamma"] / jnp.sqrt(params["running_var"] + eps)
    shift = params["beta"] - params["running_mean"] * scale
    a = jnp.maximum(x_nchw.astype(jnp.float32) * scale[None, :, None, None]
                    + shift[None, :, None, None], 0.0)

    out_full = jnp.zeros((B, Cout, H + kernel - 1, W + kernel - 1), jnp.float32)
    for i in range(kernel):
        for j in range(kernel):
            contrib = jnp.einsum("bchw,cd->bdhw", a, w[:, :, i, j])
            out_full = out_full.at[:, :, i:i + H, j:j + W].add(contrib)

    Hout = H + kernel - 1 - 2 * p
    Wout = W + kernel - 1 - 2 * p
    return out_full[:, :, p:p + Hout, p:p + Wout].astype(x_nchw.dtype)


def init_params(key, in_size, out_size, kernel):
    k = jax.random.split(key, 5)
    return {
        # nn.ConvTranspose2d(in_size, out_size, kernel, bias=False) weight
        "weight": 0.1 * jax.random.normal(k[0], (in_size, out_size, kernel, kernel),
                                          jnp.float32),
        # nn.BatchNorm2d(in_size): affine + running stats (eval mode)
        "gamma": 1.0 + 0.05 * jax.random.normal(k[1], (in_size,), jnp.float32),
        "beta": 0.05 * jax.random.normal(k[2], (in_size,), jnp.float32),
        "running_mean": 0.1 * jax.random.normal(k[3], (in_size,), jnp.float32),
        "running_var": 1.0 + 0.2 * jax.random.uniform(k[4], (in_size,), jnp.float32),
    }


if __name__ == "__main__":
    key = jax.random.PRNGKey(0)
    k_x, k_p = jax.random.split(key)

    B, Cin, H, W = 2, 8, 16, 16        # small NCHW input
    Cout, kernel = 16, 3               # Deconv(in_size=8, out_size=16, kernel=3)

    x = jax.random.normal(k_x, (B, Cin, H, W), jnp.float32)
    params = init_params(k_p, Cin, Cout, kernel)

    ref = deconv_reference(x, params, kernel=kernel)

    # f32 MXU path, one image per grid step (batch axis "parallel").
    out = jax.block_until_ready(deconv(x, params, kernel=kernel, batch_block=1))
    assert out.shape == (B, Cout, H, W), out.shape
    assert jnp.allclose(out, ref, atol=2e-3, rtol=2e-3), "f32/bb=1 mismatch"

    # f32 MXU path, both images in one grid step (amortizes per-step overhead).
    out2 = jax.block_until_ready(deconv(x, params, kernel=kernel, batch_block=2))
    assert jnp.allclose(out2, ref, atol=2e-3, rtol=2e-3), "f32/bb=2 mismatch"

    # bf16 matmul operands (v6e/v7x fast path), f32 accumulation.
    out3 = jax.block_until_ready(
        deconv(x, params, kernel=kernel, batch_block=1,
               matmul_dtype=jnp.bfloat16))
    assert jnp.allclose(out3, ref, atol=5e-2, rtol=5e-2), "bf16 mismatch"

    print("KERNEL_OK")
</pallas_src>

<mosaic_0001>
module attributes {stable_mosaic.version = 11 : i64} {
  func.func @_deconv_kernel(%arg0: i32, %arg1: memref<1x16x16x8xf32, #tpu.memory_space<vmem>>, %arg2: memref<1x8xf32, #tpu.memory_space<vmem>>, %arg3: memref<1x8xf32, #tpu.memory_space<vmem>>, %arg4: memref<8x1152xf32, #tpu.memory_space<vmem>>, %arg5: memref<1x16x16x128xf32, #tpu.memory_space<vmem>>, %arg6: memref<1x18x18x128xf32, #tpu.memory_space<vmem>>) attributes {dimension_semantics = [#tpu.dimension_semantics<parallel>], iteration_bounds = array<i64: 2>, scalar_prefetch = 0 : i64, scratch_operands = 1 : i64, tpu.core_type = #tpu.core_type<tc>, window_params = [{transform_indices = @transform_0, window_bounds = array<i64: 1, 16, 16, 8>}, {pipeline_mode = #tpu.pipeline_mode<synchronous>, transform_indices = @transform_1, window_bounds = array<i64: 1, 8>}, {pipeline_mode = #tpu.pipeline_mode<synchronous>, transform_indices = @transform_2, window_bounds = array<i64: 1, 8>}, {pipeline_mode = #tpu.pipeline_mode<synchronous>, transform_indices = @transform_3, window_bounds = array<i64: 8, 1152>}, {transform_indices = @transform_4, window_bounds = array<i64: 1, 16, 16, 128>}]} {
    %c0 = arith.constant 0 : index
    %c0_0 = arith.constant 0 : index
    %c0_1 = arith.constant 0 : index
    %c0_2 = arith.constant 0 : index
    %0 = vector.load %arg1[%c0, %c0_0, %c0_1, %c0_2] : memref<1x16x16x8xf32, #tpu.memory_space<vmem>>, vector<1x16x16x8xf32>
    %c0_3 = arith.constant 0 : index
    %c0_4 = arith.constant 0 : index
    %1 = vector.load %arg2[%c0_3, %c0_4] : memref<1x8xf32, #tpu.memory_space<vmem>>, vector<1x8xf32>
    %2 = vector.shape_cast %1 : vector<1x8xf32> to vector<1x1x1x8xf32>
    %3 = vector.broadcast %2 : vector<1x1x1x8xf32> to vector<1x16x16x8xf32>
    %4 = arith.mulf %0, %3 : vector<1x16x16x8xf32>
    %c0_5 = arith.constant 0 : index
    %c0_6 = arith.constant 0 : index
    %5 = vector.load %arg3[%c0_5, %c0_6] : memref<1x8xf32, #tpu.memory_space<vmem>>, vector<1x8xf32>
    %6 = vector.shape_cast %5 : vector<1x8xf32> to vector<1x1x1x8xf32>
    %7 = vector.broadcast %6 : vector<1x1x1x8xf32> to vector<1x16x16x8xf32>
    %8 = arith.addf %4, %7 : vector<1x16x16x8xf32>
    %cst = arith.constant 0.000000e+00 : f32
    %9 = vector.broadcast %cst : f32 to vector<1x16x16x8xf32>
    %10 = arith.maximumf %8, %9 : vector<1x16x16x8xf32>
    %11 = vector.shape_cast %10 : vector<1x16x16x8xf32> to vector<256x8xf32>
    %c0_7 = arith.constant 0 : index
    %c0_8 = arith.constant 0 : index
    %12 = vector.load %arg4[%c0_7, %c0_8] : memref<8x1152xf32, #tpu.memory_space<vmem>>, vector<8x1152xf32>
    %cst_9 = arith.constant dense<0.000000e+00> : vector<256x1152xf32>
    %13 = tpu.matmul %11, %12, %cst_9 {dimension_numbers = #tpu.dot_dimension_numbers<[1], [0], [0], [1], [0, 0, 1, 1], [], []>} : vector<256x8xf32>, vector<8x1152xf32>, vector<256x1152xf32> -> vector<256x1152xf32>
    %cst_10 = arith.constant 0.000000e+00 : f32
    %14 = vector.broadcast %cst_10 : f32 to vector<1x2x18x128xf32>
    %c0_11 = arith.constant 0 : index
    %c16 = arith.constant 16 : index
    %c0_12 = arith.constant 0 : index
    %c0_13 = arith.constant 0 : index
    %15 = vector.load %arg6[%c0_11, %c16, %c0_12, %c0_13] : memref<1x18x18x128xf32, #tpu.memory_space<vmem>>, vector<1x2x18x128xf32>
    tpu.vector_store %arg6[%c0_11, %c16, %c0_12, %c0_13], %14 {strides = array<i32>} : memref<1x18x18x128xf32, #tpu.memory_space<vmem>>, vector<1x2x18x128xf32>,
    %cst_14 = arith.constant 0.000000e+00 : f32
    %16 = vector.broadcast %cst_14 : f32 to vector<1x16x2x128xf32>
    %c0_15 = arith.constant 0 : index
    %c0_16 = arith.constant 0 : index
    %c16_17 = arith.constant 16 : index
    %c0_18 = arith.constant 0 : index
    %17 = vector.load %arg6[%c0_15, %c0_16, %c16_17, %c0_18] : memref<1x18x18x128xf32, #tpu.memory_space<vmem>>, vector<1x16x2x128xf32>
    tpu.vector_store %arg6[%c0_15, %c0_16, %c16_17, %c0_18], %16 {strides = array<i32>} : memref<1x18x18x128xf32, #tpu.memory_space<vmem>>, vector<1x16x2x128xf32>,
    %18 = vector.extract_strided_slice %13 {offsets = [0, 0], sizes = [256, 128], strides = [1, 1]} : vector<256x1152xf32> to vector<256x128xf32>
    %19 = vector.shape_cast %18 : vector<256x128xf32> to vector<1x16x16x128xf32>
    %c0_19 = arith.constant 0 : index
    %c0_20 = arith.constant 0 : index
    %c0_21 = arith.constant 0 : index
    %c0_22 = arith.constant 0 : index
    %20 = vector.load %arg6[%c0_19, %c0_20, %c0_21, %c0_22] : memref<1x18x18x128xf32, #tpu.memory_space<vmem>>, vector<1x16x16x128xf32>
    tpu.vector_store %arg6[%c0_19, %c0_20, %c0_21, %c0_22], %19 {strides = array<i32>} : memref<1x18x18x128xf32, #tpu.memory_space<vmem>>, vector<1x16x16x128xf32>,
    %21 = vector.extract_strided_slice %13 {offsets = [0, 128], sizes = [256, 128], strides = [1, 1]} : vector<256x1152xf32> to vector<256x128xf32>
    %22 = vector.shape_cast %21 : vector<256x128xf32> to vector<1x16x16x128xf32>
    %c0_23 = arith.constant 0 : index
    %c0_24 = arith.constant 0 : index
    %c1 = arith.constant 1 : index
    %c0_25 = arith.constant 0 : index
    %23 = vector.load %arg6[%c0_23, %c0_24, %c1, %c0_25] : memref<1x18x18x128xf32, #tpu.memory_space<vmem>>, vector<1x16x16x128xf32>
    %24 = arith.addf %23, %22 : vector<1x16x16x128xf32>
    %c0_26 = arith.constant 0 : index
    %c0_27 = arith.constant 0 : index
    %c1_28 = arith.constant 1 : index
    %c0_29 = arith.constant 0 : index
    %25 = vector.load %arg6[%c0_26, %c0_27, %c1_28, %c0_29] : memref<1x18x18x128xf32, #tpu.memory_space<vmem>>, vector<1x16x16x128xf32>
    tpu.vector_store %arg6[%c0_26, %c0_27, %c1_28, %c0_29], %24 {strides = array<i32>} : memref<1x18x18x128xf32, #tpu.memory_space<vmem>>, vector<1x16x16x128xf32>,
    %26 = vector.extract_strided_slice %13 {offsets = [0, 256], sizes = [256, 128], strides = [1, 1]} : vector<256x1152xf32> to vector<256x128xf32>
    %27 = vector.shape_cast %26 : vector<256x128xf32> to vector<1x16x16x128xf32>
    %c0_30 = arith.constant 0 : index
    %c0_31 = arith.constant 0 : index
    %c2 = arith.constant 2 : index
    %c0_32 = arith.constant 0 : index
    %28 = vector.load %arg6[%c0_30, %c0_31, %c2, %c0_32] : memref<1x18x18x128xf32, #tpu.memory_space<vmem>>, vector<1x16x16x128xf32>
    %29 = arith.addf %28, %27 : vector<1x16x16x128xf32>
    %c0_33 = arith.constant 0 : index
    %c0_34 = arith.constant 0 : index
    %c2_35 = arith.constant 2 : index
    %c0_36 = arith.constant 0 : index
    %30 = vector.load %arg6[%c0_33, %c0_34, %c2_35, %c0_36] : memref<1x18x18x128xf32, #tpu.memory_space<vmem>>, vector<1x16x16x128xf32>
    tpu.vector_store %arg6[%c0_33, %c0_34, %c2_35, %c0_36], %29 {strides = array<i32>} : memref<1x18x18x128xf32, #tpu.memory_space<vmem>>, vector<1x16x16x128xf32>,
    %31 = vector.extract_strided_slice %13 {offsets = [0, 384], sizes = [256, 128], strides = [1, 1]} : vector<256x1152xf32> to vector<256x128xf32>
    %32 = vector.shape_cast %31 : vector<256x128xf32> to vector<1x16x16x128xf32>
    %c0_37 = arith.constant 0 : index
    %c1_38 = arith.constant 1 : index
    %c0_39 = arith.constant 0 : index
    %c0_40 = arith.constant 0 : index
    %33 = vector.load %arg6[%c0_37, %c1_38, %c0_39, %c0_40] : memref<1x18x18x128xf32, #tpu.memory_space<vmem>>, vector<1x16x16x128xf32>
    %34 = arith.addf %33, %32 : vector<1x16x16x128xf32>
    %c0_41 = arith.constant 0 : index
    %c1_42 = arith.constant 1 : index
    %c0_43 = arith.constant 0 : index
    %c0_44 = arith.constant 0 : index
    %35 = vector.load %arg6[%c0_41, %c1_42, %c0_43, %c0_44] : memref<1x18x18x128xf32, #tpu.memory_space<vmem>>, vector<1x16x16x128xf32>
    tpu.vector_store %arg6[%c0_41, %c1_42, %c0_43, %c0_44], %34 {strides = array<i32>} : memref<1x18x18x128xf32, #tpu.memory_space<vmem>>, vector<1x16x16x128xf32>,
    %36 = vector.extract_strided_slice %13 {offsets = [0, 512], sizes = [256, 128], strides = [1, 1]} : vector<256x1152xf32> to vector<256x128xf32>
    %37 = vector.shape_cast %36 : vector<256x128xf32> to vector<1x16x16x128xf32>
    %c0_45 = arith.constant 0 : index
    %c1_46 = arith.constant 1 : index
    %c1_47 = arith.constant 1 : index
    %c0_48 = arith.constant 0 : index
    %38 = vector.load %arg6[%c0_45, %c1_46, %c1_47, %c0_48] : memref<1x18x18x128xf32, #tpu.memory_space<vmem>>, vector<1x16x16x128xf32>
    %39 = arith.addf %38, %37 : vector<1x16x16x128xf32>
    %c0_49 = arith.constant 0 : index
    %c1_50 = arith.constant 1 : index
    %c1_51 = arith.constant 1 : index
    %c0_52 = arith.constant 0 : index
    %40 = vector.load %arg6[%c0_49, %c1_50, %c1_51, %c0_52] : memref<1x18x18x128xf32, #tpu.memory_space<vmem>>, vector<1x16x16x128xf32>
    tpu.vector_store %arg6[%c0_49, %c1_50, %c1_51, %c0_52], %39 {strides = array<i32>} : memref<1x18x18x128xf32, #tpu.memory_space<vmem>>, vector<1x16x16x128xf32>,
    %41 = vector.extract_strided_slice %13 {offsets = [0, 640], sizes = [256, 128], strides = [1, 1]} : vector<256x1152xf32> to vector<256x128xf32>
    %42 = vector.shape_cast %41 : vector<256x128xf32> to vector<1x16x16x128xf32>
    %c0_53 = arith.constant 0 : index
    %c1_54 = arith.constant 1 : index
    %c2_55 = arith.constant 2 : index
    %c0_56 = arith.constant 0 : index
    %43 = vector.load %arg6[%c0_53, %c1_54, %c2_55, %c0_56] : memref<1x18x18x128xf32, #tpu.memory_space<vmem>>, vector<1x16x16x128xf32>
    %44 = arith.addf %43, %42 : vector<1x16x16x128xf32>
    %c0_57 = arith.constant 0 : index
    %c1_58 = arith.constant 1 : index
    %c2_59 = arith.constant 2 : index
    %c0_60 = arith.constant 0 : index
    %45 = vector.load %arg6[%c0_57, %c1_58, %c2_59, %c0_60] : memref<1x18x18x128xf32, #tpu.memory_space<vmem>>, vector<1x16x16x128xf32>
    tpu.vector_store %arg6[%c0_57, %c1_58, %c2_59, %c0_60], %44 {strides = array<i32>} : memref<1x18x18x128xf32, #tpu.memory_space<vmem>>, vector<1x16x16x128xf32>,
    %46 = vector.extract_strided_slice %13 {offsets = [0, 768], sizes = [256, 128], strides = [1, 1]} : vector<256x1152xf32> to vector<256x128xf32>
    %47 = vector.shape_cast %46 : vector<256x128xf32> to vector<1x16x16x128xf32>
    %c0_61 = arith.constant 0 : index
    %c2_62 = arith.constant 2 : index
    %c0_63 = arith.constant 0 : index
    %c0_64 = arith.constant 0 : index
    %48 = vector.load %arg6[%c0_61, %c2_62, %c0_63, %c0_64] : memref<1x18x18x128xf32, #tpu.memory_space<vmem>>, vector<1x16x16x128xf32>
    %49 = arith.addf %48, %47 : vector<1x16x16x128xf32>
    %c0_65 = arith.constant 0 : index
    %c2_66 = arith.constant 2 : index
    %c0_67 = arith.constant 0 : index
    %c0_68 = arith.constant 0 : index
    %50 = vector.load %arg6[%c0_65, %c2_66, %c0_67, %c0_68] : memref<1x18x18x128xf32, #tpu.memory_space<vmem>>, vector<1x16x16x128xf32>
    tpu.vector_store %arg6[%c0_65, %c2_66, %c0_67, %c0_68], %49 {strides = array<i32>} : memref<1x18x18x128xf32, #tpu.memory_space<vmem>>, vector<1x16x16x128xf32>,
    %51 = vector.extract_strided_slice %13 {offsets = [0, 896], sizes = [256, 128], strides = [1, 1]} : vector<256x1152xf32> to vector<256x128xf32>
    %52 = vector.shape_cast %51 : vector<256x128xf32> to vector<1x16x16x128xf32>
    %c0_69 = arith.constant 0 : index
    %c2_70 = arith.constant 2 : index
    %c1_71 = arith.constant 1 : index
    %c0_72 = arith.constant 0 : index
    %53 = vector.load %arg6[%c0_69, %c2_70, %c1_71, %c0_72] : memref<1x18x18x128xf32, #tpu.memory_space<vmem>>, vector<1x16x16x128xf32>
    %54 = arith.addf %53, %52 : vector<1x16x16x128xf32>
    %c0_73 = arith.constant 0 : index
    %c2_74 = arith.constant 2 : index
    %c1_75 = arith.constant 1 : index
    %c0_76 = arith.constant 0 : index
    %55 = vector.load %arg6[%c0_73, %c2_74, %c1_75, %c0_76] : memref<1x18x18x128xf32, #tpu.memory_space<vmem>>, vector<1x16x16x128xf32>
    tpu.vector_store %arg6[%c0_73, %c2_74, %c1_75, %c0_76], %54 {strides = array<i32>} : memref<1x18x18x128xf32, #tpu.memory_space<vmem>>, vector<1x16x16x128xf32>,
    %56 = vector.extract_strided_slice %13 {offsets = [0, 1024], sizes = [256, 128], strides = [1, 1]} : vector<256x1152xf32> to vector<256x128xf32>
    %57 = vector.shape_cast %56 : vector<256x128xf32> to vector<1x16x16x128xf32>
    %c0_77 = arith.constant 0 : index
    %c2_78 = arith.constant 2 : index
    %c2_79 = arith.constant 2 : index
    %c0_80 = arith.constant 0 : index
    %58 = vector.load %arg6[%c0_77, %c2_78, %c2_79, %c0_80] : memref<1x18x18x128xf32, #tpu.memory_space<vmem>>, vector<1x16x16x128xf32>
    %59 = arith.addf %58, %57 : vector<1x16x16x128xf32>
    %c0_81 = arith.constant 0 : index
    %c2_82 = arith.constant 2 : index
    %c2_83 = arith.constant 2 : index
    %c0_84 = arith.constant 0 : index
    %60 = vector.load %arg6[%c0_81, %c2_82, %c2_83, %c0_84] : memref<1x18x18x128xf32, #tpu.memory_space<vmem>>, vector<1x16x16x128xf32>
    tpu.vector_store %arg6[%c0_81, %c2_82, %c2_83, %c0_84], %59 {strides = array<i32>} : memref<1x18x18x128xf32, #tpu.memory_space<vmem>>, vector<1x16x16x128xf32>,
    %c0_85 = arith.constant 0 : index
    %c1_86 = arith.constant 1 : index
    %c1_87 = arith.constant 1 : index
    %c0_88 = arith.constant 0 : index
    %61 = vector.load %arg6[%c0_85, %c1_86, %c1_87, %c0_88] : memref<1x18x18x128xf32, #tpu.memory_space<vmem>>, vector<1x16x16x128xf32>
    %c0_89 = arith.constant 0 : index
    %c0_90 = arith.constant 0 : index
    %c0_91 = arith.constant 0 : index
    %c0_92 = arith.constant 0 : index
    %62 = vector.load %arg5[%c0_89, %c0_90, %c0_91, %c0_92] : memref<1x16x16x128xf32, #tpu.memory_space<vmem>>, vector<1x16x16x128xf32>
    tpu.vector_store %arg5[%c0_89, %c0_90, %c0_91, %c0_92], %61 {strides = array<i32>} : memref<1x16x16x128xf32, #tpu.memory_space<vmem>>, vector<1x16x16x128xf32>,
    return
  }
  func.func @transform_0(%arg0: i32) -> (i32, i32, i32, i32) {
    %c0_i32 = arith.constant 0 : i32
    %c0_i32_0 = arith.constant 0 : i32
    %c0_i32_1 = arith.constant 0 : i32
    %c0_i32_2 = arith.constant 0 : i32
    return %arg0, %c0_i32, %c0_i32_0, %c0_i32_1 : i32, i32, i32, i32
  }
  func.func @transform_1(%arg0: i32) -> (i32, i32) {
    %c0_i32 = arith.constant 0 : i32
    %c0_i32_0 = arith.constant 0 : i32
    %c0_i32_1 = arith.constant 0 : i32
    return %c0_i32, %c0_i32_0 : i32, i32
  }
  func.func @transform_2(%arg0: i32) -> (i32, i32) {
    %c0_i32 = arith.constant 0 : i32
    %c0_i32_0 = arith.constant 0 : i32
    %c0_i32_1 = arith.constant 0 : i32
    return %c0_i32, %c0_i32_0 : i32, i32
  }
  func.func @transform_3(%arg0: i32) -> (i32, i32) {
    %c0_i32 = arith.constant 0 : i32
    %c0_i32_0 = arith.constant 0 : i32
    %c0_i32_1 = arith.constant 0 : i32
    return %c0_i32, %c0_i32_0 : i32, i32
  }
  func.func @transform_4(%arg0: i32) -> (i32, i32, i32, i32) {
    %c0_i32 = arith.constant 0 : i32
    %c0_i32_0 = arith.constant 0 : i32
    %c0_i32_1 = arith.constant 0 : i32
    %c0_i32_2 = arith.constant 0 : i32
    return %arg0, %c0_i32, %c0_i32_0, %c0_i32_1 : i32, i32, i32, i32
  }
}

</mosaic_0001>

<llo_original>
// kernel: tpu_custom_call.1
$region0: #{tpu_custom_call.1}
  #allocation0 [shape = 'u32[]', space=smem, size = 0x4, offset = 0x4, fixed_abs, tag = 'smem constant byte address 0x4 - core index']
  #allocation1 [shape = 'u32[72,128]{1,0:T(1,128)}', space=vmem, size = 0x9000, scoped, tag = 'internal scratch']
  #allocation2 [shape = 'f32[1,18,18,128]{3,2,1,0:T(8,128)}', space=vmem, size = 0x36000, scoped, tag = 'scratch operand']
  %s0 = inlined_call_operand.vmem [shape: f32[2,16,16,8], index: 0, kind: input, shape index: {}]
  %s1 = inlined_call_operand.vmem [shape: f32[1,8], index: 1, kind: input, shape index: {}]
  %s2 = inlined_call_operand.vmem [shape: f32[1,8], index: 2, kind: input, shape index: {}]
  %s3 = inlined_call_operand.vmem [shape: f32[8,1152], index: 3, kind: input, shape index: {}]
  %s4 = inlined_call_operand.hbm [shape: f32[2,16,16,128], index: 4, kind: output, shape index: {}]
  %s5 = sld [smem:[#allocation0]]
  $region49: #{tpu_custom_call.1} parent=0
    _
  %s7 = ssub.s32 1, %s5
  %s8 = scalar_select 0, %s7, %s5
  $region1: #{tpu_custom_call.1} parent=0
    #allocation3 [shape = 'u8[262144]{0}', space=vmem, size = 0x40000, scoped, tag = 'output window, operand 0']
    #allocation4 [shape = 's32[2]{0}', space=sflag, size = 0x8, scoped, tag = 'scoped memory for tpu_custom_call.1']
    %9 = vsyncpa [#allocation4], 0
    %s10 = scalar_lea.sflag [#allocation4], 1
    %11 = vsyncpa %s10, 0
    loop: start=0, step=1, limit=4
    $region2: #{tpu_custom_call.1} parent=1 // loop_pre_header
      _
    $region3: #{tpu_custom_call.1} parent=1 // loop_header
      %s13 = sphi 0, %s17
      %p14 = scmp.ge.s32.totalorder %s13, 4
      %s23 = sphi 0, %s25
      %s26 = sphi 0, %s23
      %s27 = sphi 0, %s26
      %s43 = sphi 0, %s27
      %s47 = sphi 0, %s47
      %s49 = sphi 0, %s47
      %s50 = sphi 0, %s49
      %s64 = sphi 0, %s50
      %s68 = sphi 0, %s68
      %s70 = sphi 0, %s68
      %s71 = sphi 0, %s70
      %s85 = sphi 0, %s71
      %s89 = sphi 0, %s89
      %s91 = sphi 0, %s89
      %s92 = sphi 0, %s91
      %s106 = sphi 0, %s92
      %s112 = sphi 0, %s114
      %s115 = sphi 0, %s112
      %s116 = sphi 0, %s115
      %s132 = sphi 0, %s116
    $region4: #{tpu_custom_call.1} parent=1 // loop_header_branch
      %16 = sbr.rel (%p14) target = $region8
    $region5: #{tpu_custom_call.1} parent=1 // loop_body
      %s18 = ssub.s32 %s13, 1
      %s19 = ssub.s32 %s13, 2
      %s20 = sadd.s32 %s13, 1
      %s21 = ssub.s32 %s13, %s20
      %p22 = scmp.eq.s32.totalorder %s21, 0
      %s24 = sadd.s32 %s23, 1
      %s25 = scalar_select %p22, %s23, %s24
      %p28 = pneg %p22
      %p29 = scmp.eq.s32.totalorder %s13, 1
      %p30 = por %p28, %p29
      %p31 = scmp.ne.s32.totalorder %s23, %s26
      %p32 = scmp.eq.s32.totalorder %s13, 0
      %p33 = por %p31, %p32
      %p34 = scmp.ne.s32.totalorder %s23, %s26
      %p35 = scmp.eq.s32.totalorder %s18, 1
      %p36 = por %p34, %p35
      %p37 = scmp.ne.s32.totalorder %s26, %s27
      %p38 = scmp.eq.s32.totalorder %s18, 0
      %p39 = por %p37, %p38
      %p40 = scmp.ne.s32.totalorder %s26, %s27
      %p41 = scmp.eq.s32.totalorder %s19, 1
      %p42 = por %p40, %p41
      %p44 = scmp.ne.s32.totalorder %s27, %s43
      %p45 = scmp.eq.s32.totalorder %s19, 0
      %p46 = por %p44, %p45
      %s48 = sadd.s32 %s47, 1
      %p51 = scmp.eq.s32.totalorder %s13, 1
      %p52 = scmp.ne.s32.totalorder %s47, %s49
      %p53 = scmp.eq.s32.totalorder %s13, 0
      %p54 = por %p52, %p53
      %p55 = scmp.ne.s32.totalorder %s47, %s49
      %p56 = scmp.eq.s32.totalorder %s18, 1
      %p57 = por %p55, %p56
      %p58 = scmp.ne.s32.totalorder %s49, %s50
      %p59 = scmp.eq.s32.totalorder %s18, 0
      %p60 = por %p58, %p59
      %p61 = scmp.ne.s32.totalorder %s49, %s50
      %p62 = scmp.eq.s32.totalorder %s19, 1
      %p63 = por %p61, %p62
      %p65 = scmp.ne.s32.totalorder %s50, %s64
      %p66 = scmp.eq.s32.totalorder %s19, 0
      %p67 = por %p65, %p66
      %s69 = sadd.s32 %s68, 1
      %p72 = scmp.eq.s32.totalorder %s13, 1
      %p73 = scmp.ne.s32.totalorder %s68, %s70
      %p74 = scmp.eq.s32.totalorder %s13, 0
      %p75 = por %p73, %p74
      %p76 = scmp.ne.s32.totalorder %s68, %s70
      %p77 = scmp.eq.s32.totalorder %s18, 1
      %p78 = por %p76, %p77
      %p79 = scmp.ne.s32.totalorder %s70, %s71
      %p80 = scmp.eq.s32.totalorder %s18, 0
      %p81 = por %p79, %p80
      %p82 = scmp.ne.s32.totalorder %s70, %s71
      %p83 = scmp.eq.s32.totalorder %s19, 1
      %p84 = por %p82, %p83
      %p86 = scmp.ne.s32.totalorder %s71, %s85
      %p87 = scmp.eq.s32.totalorder %s19, 0
      %p88 = por %p86, %p87
      %s90 = sadd.s32 %s89, 1
      %p93 = scmp.eq.s32.totalorder %s13, 1
      %p94 = scmp.ne.s32.totalorder %s89, %s91
      %p95 = scmp.eq.s32.totalorder %s13, 0
      %p96 = por %p94, %p95
      %p97 = scmp.ne.s32.totalorder %s89, %s91
      %p98 = scmp.eq.s32.totalorder %s18, 1
      %p99 = por %p97, %p98
      %p100 = scmp.ne.s32.totalorder %s91, %s92
      %p101 = scmp.eq.s32.totalorder %s18, 0
      %p102 = por %p100, %p101
      %p103 = scmp.ne.s32.totalorder %s91, %s92
      %p104 = scmp.eq.s32.totalorder %s19, 1
      %p105 = por %p103, %p104
      %p107 = scmp.ne.s32.totalorder %s92, %s106
      %p108 = scmp.eq.s32.totalorder %s19, 0
      %p109 = por %p107, %p108
      %s110 = ssub.s32 %s13, %s20
      %p111 = scmp.eq.s32.totalorder %s110, 0
      %s113 = sadd.s32 %s112, 1
      %s114 = scalar_select %p111, %s112, %s113
      %p117 = pneg %p111
      %p118 = scmp.eq.s32.totalorder %s13, 1
      %p119 = por %p117, %p118
      %p120 = scmp.ne.s32.totalorder %s112, %s115
      %p121 = scmp.eq.s32.totalorder %s13, 0
      %p122 = por %p120, %p121
      %p123 = scmp.ne.s32.totalorder %s112, %s115
      %p124 = scmp.eq.s32.totalorder %s18, 1
      %p125 = por %p123, %p124
      %p126 = scmp.ne.s32.totalorder %s115, %s116
      %p127 = scmp.eq.s32.totalorder %s18, 0
      %p128 = por %p126, %p127
      %p129 = scmp.ne.s32.totalorder %s115, %s116
      %p130 = scmp.eq.s32.totalorder %s19, 1
      %p131 = por %p129, %p130
      %p133 = scmp.ne.s32.totalorder %s116, %s132
      %p134 = scmp.eq.s32.totalorder %s19, 0
      %p135 = por %p133, %p134
      %p136 = scmp.le.s32.totalorder 1, %s13
      %p137 = scmp.lt.s32.totalorder %s13, 3
      %p138 = pnand %p136, %p137
      %p139 = pneg %p138
      // Predicated region
      $region9: #{tpu_custom_call.1} parent=5 // pred_check
        _
      $region10: #{tpu_custom_call.1} parent=5 // pred_check_branch
        %141 = sbr.rel (%p138) target = $region12
      $region11: #{tpu_custom_call.1} parent=5 // pred_region
        %s142 = ssub.s32 %s13, 1
        // Predicated region
        $region13: #{tpu_custom_call.1} parent=11 // pred_check
          %p143 = pneg %p60
        $region14: #{tpu_custom_call.1} parent=11 // pred_check_branch
          %145 = sbr.rel (%p143) target = $region16
        $region15: #{tpu_custom_call.1} parent=11 // pred_region
          _
        $region16: #{tpu_custom_call.1} parent=11 // pred_fallthru
          _
        // Predicated region
        $region17: #{tpu_custom_call.1} parent=11 // pred_check
          %p146 = pneg %p81
        $region18: #{tpu_custom_call.1} parent=11 // pred_check_branch
          %148 = sbr.rel (%p146) target = $region20
        $region19: #{tpu_custom_call.1} parent=11 // pred_region
          _
        $region20: #{tpu_custom_call.1} parent=11 // pred_fallthru
          _
        // Predicated region
        $region21: #{tpu_custom_call.1} parent=11 // pred_check
          %p149 = pneg %p102
        $region22: #{tpu_custom_call.1} parent=11 // pred_check_branch
          %151 = sbr.rel (%p149) target = $region24
        $region23: #{tpu_custom_call.1} parent=11 // pred_region
          _
        $region24: #{tpu_custom_call.1} parent=11 // pred_fallthru
          _
      $region12: #{tpu_custom_call.1} parent=5 // pred_fallthru
        _
      %p152 = scmp.lt.s32.totalorder %s13, 2
      // Predicated region
      $region25: #{tpu_custom_call.1} parent=5 // pred_check
        %p153 = pneg %p152
      $region26: #{tpu_custom_call.1} parent=5 // pred_check_branch
        %155 = sbr.rel (%p153) target = $region28
      $region27: #{tpu_custom_call.1} parent=5 // pred_region
        // Predicated region
        $region29: #{tpu_custom_call.1} parent=27 // pred_check
          %p156 = pneg %p33
        $region30: #{tpu_custom_call.1} parent=27 // pred_check_branch
          %158 = sbr.rel (%p156) target = $region32
        $region31: #{tpu_custom_call.1} parent=27 // pred_region
          %p159 = scmp.lt.s32.totalorder %s13, 1
          %s160 = scalar_select %p159, %s13, 1
          %s161 = smul.addr %s160, 32
          %s162 = smul.addr %s161, 8
          %s163 = scalar_lea.vmem %s0, %s162
        $region32: #{tpu_custom_call.1} parent=27 // pred_fallthru
          _
      $region28: #{tpu_custom_call.1} parent=5 // pred_fallthru
        _
      %p164 = scmp.le.s32.totalorder 1, %s13
      %p165 = scmp.lt.s32.totalorder %s13, 3
      %p166 = pnand %p164, %p165
      %p167 = pneg %p166
      // Predicated region
      $region33: #{tpu_custom_call.1} parent=5 // pred_check
        _
      $region34: #{tpu_custom_call.1} parent=5 // pred_check_branch
        %169 = sbr.rel (%p166) target = $region36
      $region35: #{tpu_custom_call.1} parent=5 // pred_region
        %s170 = ssub.s32 %s13, 1
        %p171 = scmp.lt.s32.totalorder %s18, 1
        %s172 = scalar_select %p171, %s18, 1
        %s173 = smul.addr %s172, 32
        %s174 = smul.addr %s173, 8
        %s175 = scalar_lea.vmem %s0, %s174
        %p176 = pneg %p39
        %p177 = pneg %p36
        %p178 = pneg %p60
        %p179 = pneg %p57
        %p180 = pneg %p81
        %p181 = pneg %p78
        %p182 = pneg %p102
        %p183 = pneg %p99
        %p184 = pneg %p128
        %p185 = pneg %p125
        %s186 = sand.u32 %s115, 1
        %s187 = scalar_lea.sflag [#allocation4], %s186
        %s188 = sand.u32 %s115, 1
        %s189 = smul.addr %s188, 256
        %s190 = scalar_lea.vmem [#allocation3], %s189
        %p191 = scmp.lt.s32.totalorder %s18, 1
        %s192 = scalar_select %p191, %s18, 1
        %s193 = smul.addr %s192, 32
        %s194 = smul.addr %s193, 8
        %s195 = scalar_lea.vmem %s0, %s194
        %v196 = vld [vmem:[%s195] sm:$0xff]
        %v197 = vld [vmem:[%s195 + $0x8] sm:$0xff]
        %v198 = vld [vmem:[%s195 + $0x10] sm:$0xff]
        %v199 = vld [vmem:[%s195 + $0x18] sm:$0xff]
        %v200 = vld [vmem:[%s195 + $0x20] sm:$0xff]
        %v201 = vld [vmem:[%s195 + $0x28] sm:$0xff]
        %v202 = vld [vmem:[%s195 + $0x30] sm:$0xff]
        %v203 = vld [vmem:[%s195 + $0x38] sm:$0xff]
        %v204 = vld [vmem:[%s195 + $0x40] sm:$0xff]
        %v205 = vld [vmem:[%s195 + $0x48] sm:$0xff]
        %v206 = vld [vmem:[%s195 + $0x50] sm:$0xff]
        %v207 = vld [vmem:[%s195 + $0x58] sm:$0xff]
        %v208 = vld [vmem:[%s195 + $0x60] sm:$0xff]
        %v209 = vld [vmem:[%s195 + $0x68] sm:$0xff]
        %v210 = vld [vmem:[%s195 + $0x70] sm:$0xff]
        %v211 = vld [vmem:[%s195 + $0x78] sm:$0xff]
        %v212 = vld [vmem:[%s195 + $0x80] sm:$0xff]
        %v213 = vld [vmem:[%s195 + $0x88] sm:$0xff]
        %v214 = vld [vmem:[%s195 + $0x90] sm:$0xff]
        %v215 = vld [vmem:[%s195 + $0x98] sm:$0xff]
        %v216 = vld [vmem:[%s195 + $0xa0] sm:$0xff]
        %v217 = vld [vmem:[%s195 + $0xa8] sm:$0xff]
        %v218 = vld [vmem:[%s195 + $0xb0] sm:$0xff]
        %v219 = vld [vmem:[%s195 + $0xb8] sm:$0xff]
        %v220 = vld [vmem:[%s195 + $0xc0] sm:$0xff]
        %v221 = vld [vmem:[%s195 + $0xc8] sm:$0xff]
        %v222 = vld [vmem:[%s195 + $0xd0] sm:$0xff]
        %v223 = vld [vmem:[%s195 + $0xd8] sm:$0xff]
        %v224 = vld [vmem:[%s195 + $0xe0] sm:$0xff]
        %v225 = vld [vmem:[%s195 + $0xe8] sm:$0xff]
        %v226 = vld [vmem:[%s195 + $0xf0] sm:$0xff]
        %v227 = vld [vmem:[%s195 + $0xf8] sm:$0xff]
        %v228 = vld [vmem:[%s1] sm:$0x1]
        %v230 = vperm.slane %v228, 0
        %v232 = vmul.f32 %v196, %v230
        %v233 = vmul.f32 %v197, %v230
        %v234 = vmul.f32 %v198, %v230
        %v235 = vmul.f32 %v199, %v230
        %v236 = vmul.f32 %v200, %v230
        %v237 = vmul.f32 %v201, %v230
        %v238 = vmul.f32 %v202, %v230
        %v239 = vmul.f32 %v203, %v230
        %v240 = vmul.f32 %v204, %v230
        %v241 = vmul.f32 %v205, %v230
        %v242 = vmul.f32 %v206, %v230
        %v243 = vmul.f32 %v207, %v230
        %v244 = vmul.f32 %v208, %v230
        %v245 = vmul.f32 %v209, %v230
        %v246 = vmul.f32 %v210, %v230
        %v247 = vmul.f32 %v211, %v230
        %v248 = vmul.f32 %v212, %v230
        %v249 = vmul.f32 %v213, %v230
        %v250 = vmul.f32 %v214, %v230
        %v251 = vmul.f32 %v215, %v230
        %v252 = vmul.f32 %v216, %v230
        %v253 = vmul.f32 %v217, %v230
        %v254 = vmul.f32 %v218, %v230
        %v255 = vmul.f32 %v219, %v230
        %v256 = vmul.f32 %v220, %v230
        %v257 = vmul.f32 %v221, %v230
        %v258 = vmul.f32 %v222, %v230
        %v259 = vmul.f32 %v223, %v230
        %v260 = vmul.f32 %v224, %v230
        %v261 = vmul.f32 %v225, %v230
        %v262 = vmul.f32 %v226, %v230
        %v263 = vmul.f32 %v227, %v230
        %v264 = vld [vmem:[%s2] sm:$0x1]
        %v266 = vperm.slane %v264, 0
        %v268 = vadd.f32 %v232, %v266
        %v269 = vadd.f32 %v233, %v266
        %v270 = vadd.f32 %v234, %v266
        %v271 = vadd.f32 %v235, %v266
        %v272 = vadd.f32 %v236, %v266
        %v273 = vadd.f32 %v237, %v266
        %v274 = vadd.f32 %v238, %v266
        %v275 = vadd.f32 %v239, %v266
        %v276 = vadd.f32 %v240, %v266
        %v277 = vadd.f32 %v241, %v266
        %v278 = vadd.f32 %v242, %v266
        %v279 = vadd.f32 %v243, %v266
        %v280 = vadd.f32 %v244, %v266
        %v281 = vadd.f32 %v245, %v266
        %v282 = vadd.f32 %v246, %v266
        %v283 = vadd.f32 %v247, %v266
        %v284 = vadd.f32 %v248, %v266
        %v285 = vadd.f32 %v249, %v266
        %v286 = vadd.f32 %v250, %v266
        %v287 = vadd.f32 %v251, %v266
        %v288 = vadd.f32 %v252, %v266
        %v289 = vadd.f32 %v253, %v266
        %v290 = vadd.f32 %v254, %v266
        %v291 = vadd.f32 %v255, %v266
        %v292 = vadd.f32 %v256, %v266
        %v293 = vadd.f32 %v257, %v266
        %v294 = vadd.f32 %v258, %v266
        %v295 = vadd.f32 %v259, %v266
        %v296 = vadd.f32 %v260, %v266
        %v297 = vadd.f32 %v261, %v266
        %v298 = vadd.f32 %v262, %v266
        %v299 = vadd.f32 %v263, %v266
        %v300 = vmax.f32 %v268, 0.0
        %v301 = vmax.f32 %v269, 0.0
        %v302 = vmax.f32 %v270, 0.0
        %v303 = vmax.f32 %v271, 0.0
        %v304 = vmax.f32 %v272, 0.0
        %v305 = vmax.f32 %v273, 0.0
        %v306 = vmax.f32 %v274, 0.0
        %v307 = vmax.f32 %v275, 0.0
        %v308 = vmax.f32 %v276, 0.0
        %v309 = vmax.f32 %v277, 0.0
        %v310 = vmax.f32 %v278, 0.0
        %v311 = vmax.f32 %v279, 0.0
        %v312 = vmax.f32 %v280, 0.0
        %v313 = vmax.f32 %v281, 0.0
        %v314 = vmax.f32 %v282, 0.0
        %v315 = vmax.f32 %v283, 0.0
        %v316 = vmax.f32 %v284, 0.0
        %v317 = vmax.f32 %v285, 0.0
        %v318 = vmax.f32 %v286, 0.0
        %v319 = vmax.f32 %v287, 0.0
        %v320 = vmax.f32 %v288, 0.0
        %v321 = vmax.f32 %v289, 0.0
        %v322 = vmax.f32 %v290, 0.0
        %v323 = vmax.f32 %v291, 0.0
        %v324 = vmax.f32 %v292, 0.0
        %v325 = vmax.f32 %v293, 0.0
        %v326 = vmax.f32 %v294, 0.0
        %v327 = vmax.f32 %v295, 0.0
        %v328 = vmax.f32 %v296, 0.0
        %v329 = vmax.f32 %v297, 0.0
        %v330 = vmax.f32 %v298, 0.0
        %v331 = vmax.f32 %v299, 0.0
        %v332 = vld [vmem:[%s3] sm:$0xff]
        %v333 = vld [vmem:[%s3 + $0x8] sm:$0xff]
        %v334 = vld [vmem:[%s3 + $0x10] sm:$0xff]
        %v335 = vld [vmem:[%s3 + $0x18] sm:$0xff]
        %v336 = vld [vmem:[%s3 + $0x20] sm:$0xff]
        %v337 = vld [vmem:[%s3 + $0x28] sm:$0xff]
        %v338 = vld [vmem:[%s3 + $0x30] sm:$0xff]
        %v339 = vld [vmem:[%s3 + $0x38] sm:$0xff]
        %v340 = vld [vmem:[%s3 + $0x40] sm:$0xff]
        %vm341 = vcmask 64512
        %v343 = vsel %vm341, %v300, 0
        %v346 = vsel %vm341, %v301, 0
        %v349 = vsel %vm341, %v302, 0
        %v352 = vsel %vm341, %v303, 0
        %v355 = vsel %vm341, %v304, 0
        %v358 = vsel %vm341, %v305, 0
        %v361 = vsel %vm341, %v306, 0
        %v364 = vsel %vm341, %v307, 0
        %v367 = vsel %vm341, %v308, 0
        %v370 = vsel %vm341, %v309, 0
        %v373 = vsel %vm341, %v310, 0
        %v376 = vsel %vm341, %v311, 0
        %v379 = vsel %vm341, %v312, 0
        %v382 = vsel %vm341, %v313, 0
        %v385 = vsel %vm341, %v314, 0
        %v388 = vsel %vm341, %v315, 0
        %v391 = vsel %vm341, %v316, 0
        %v394 = vsel %vm341, %v317, 0
        %v397 = vsel %vm341, %v318, 0
        %v400 = vsel %vm341, %v319, 0
        %v403 = vsel %vm341, %v320, 0
        %v406 = vsel %vm341, %v321, 0
        %v409 = vsel %vm341, %v322, 0
        %v412 = vsel %vm341, %v323, 0
        %v415 = vsel %vm341, %v324, 0
        %v418 = vsel %vm341, %v325, 0
        %v421 = vsel %vm341, %v326, 0
        %v424 = vsel %vm341, %v327, 0
        %v427 = vsel %vm341, %v328, 0
        %v430 = vsel %vm341, %v329, 0
        %v433 = vsel %vm341, %v330, 0
        %v436 = vsel %vm341, %v331, 0
        %438 = vmatpush.msra.mxu0 0.0
        %439 = vmatpush.msra.mxu0 0.0
        %440 = vmatpush.msra.mxu0 0.0
        %441 = vmatpush.msra.mxu0 0.0
        %442 = vmatpush.msra.mxu0 0.0
        %443 = vmatpush.msra.mxu0 0.0
        %444 = vmatpush.msra.mxu0 0.0
        %445 = vmatpush.msra.mxu0 0.0
        %446 = vmatpush.msra.mxu0 0.0
        %447 = vmatpush.msra.mxu0 0.0
        %448 = vmatpush.msra.mxu0 0.0
        %449 = vmatpush.msra.mxu0 0.0
        %450 = vmatpush.msra.mxu0 0.0
        %451 = vmatpush.msra.mxu0 0.0
        %452 = vmatpush.msra.mxu0 0.0
        %453 = vmatpush.msra.mxu0 %v332
        %454 = vmatmul.f32.gmra.mxu0 %v343
        %v455 = vpop.f32.mrf.mxu0
        %v456 = vadd.f32 0.0, %v455
        %457 = vmatmul.f32.gmra.mxu0 %v346
        %v458 = vpop.f32.mrf.mxu0
        %v459 = vadd.f32 0.0, %v458
        %460 = vmatmul.f32.gmra.mxu0 %v349
        %v461 = vpop.f32.mrf.mxu0
        %v462 = vadd.f32 0.0, %v461
        %463 = vmatmul.f32.gmra.mxu0 %v352
        %v464 = vpop.f32.mrf.mxu0
        %v465 = vadd.f32 0.0, %v464
        %466 = vmatmul.f32.gmra.mxu0 %v355
        %v467 = vpop.f32.mrf.mxu0
        %v468 = vadd.f32 0.0, %v467
        %469 = vmatmul.f32.gmra.mxu0 %v358
        %v470 = vpop.f32.mrf.mxu0
        %v471 = vadd.f32 0.0, %v470
        %472 = vmatmul.f32.gmra.mxu0 %v361
        %v473 = vpop.f32.mrf.mxu0
        %v474 = vadd.f32 0.0, %v473
        %475 = vmatmul.f32.gmra.mxu0 %v364
        %v476 = vpop.f32.mrf.mxu0
        %v477 = vadd.f32 0.0, %v476
        %478 = vmatmul.f32.gmra.mxu0 %v367
        %v479 = vpop.f32.mrf.mxu0
        %v480 = vadd.f32 0.0, %v479
        %481 = vmatmul.f32.gmra.mxu0 %v370
        %v482 = vpop.f32.mrf.mxu0
        %v483 = vadd.f32 0.0, %v482
        %484 = vmatmul.f32.gmra.mxu0 %v373
        %v485 = vpop.f32.mrf.mxu0
        %v486 = vadd.f32 0.0, %v485
        %487 = vmatmul.f32.gmra.mxu0 %v376
        %v488 = vpop.f32.mrf.mxu0
        %v489 = vadd.f32 0.0, %v488
        %490 = vmatmul.f32.gmra.mxu0 %v379
        %v491 = vpop.f32.mrf.mxu0
        %v492 = vadd.f32 0.0, %v491
        %493 = vmatmul.f32.gmra.mxu0 %v382
        %v494 = vpop.f32.mrf.mxu0
        %v495 = vadd.f32 0.0, %v494
        %496 = vmatmul.f32.gmra.mxu0 %v385
        %v497 = vpop.f32.mrf.mxu0
        %v498 = vadd.f32 0.0, %v497
        %499 = vmatmul.f32.gmra.mxu0 %v388
        %v500 = vpop.f32.mrf.mxu0
        %v501 = vadd.f32 0.0, %v500
        %502 = vmatmul.f32.gmra.mxu0 %v391
        %v503 = vpop.f32.mrf.mxu0
        %v504 = vadd.f32 0.0, %v503
        %505 = vmatmul.f32.gmra.mxu0 %v394
        %v506 = vpop.f32.mrf.mxu0
        %v507 = vadd.f32 0.0, %v506
        %508 = vmatmul.f32.gmra.mxu0 %v397
        %v509 = vpop.f32.mrf.mxu0
        %v510 = vadd.f32 0.0, %v509
        %511 = vmatmul.f32.gmra.mxu0 %v400
        %v512 = vpop.f32.mrf.mxu0
        %v513 = vadd.f32 0.0, %v512
        %514 = vmatmul.f32.gmra.mxu0 %v403
        %v515 = vpop.f32.mrf.mxu0
        %v516 = vadd.f32 0.0, %v515
        %517 = vmatmul.f32.gmra.mxu0 %v406
        %v518 = vpop.f32.mrf.mxu0
        %v519 = vadd.f32 0.0, %v518
        %520 = vmatmul.f32.gmra.mxu0 %v409
        %v521 = vpop.f32.mrf.mxu0
        %v522 = vadd.f32 0.0, %v521
        %523 = vmatmul.f32.gmra.mxu0 %v412
        %v524 = vpop.f32.mrf.mxu0
        %v525 = vadd.f32 0.0, %v524
        %526 = vmatmul.f32.gmra.mxu0 %v415
        %v527 = vpop.f32.mrf.mxu0
        %v528 = vadd.f32 0.0, %v527
        %529 = vmatmul.f32.gmra.mxu0 %v418
        %v530 = vpop.f32.mrf.mxu0
        %v531 = vadd.f32 0.0, %v530
        %532 = vmatmul.f32.gmra.mxu0 %v421
        %v533 = vpop.f32.mrf.mxu0
        %v534 = vadd.f32 0.0, %v533
        %535 = vmatmul.f32.gmra.mxu0 %v424
        %v536 = vpop.f32.mrf.mxu0
        %v537 = vadd.f32 0.0, %v536
        %538 = vmatmul.f32.gmra.mxu0 %v427
        %v539 = vpop.f32.mrf.mxu0
        %v540 = vadd.f32 0.0, %v539
        %541 = vmatmul.f32.gmra.mxu0 %v430
        %v542 = vpop.f32.mrf.mxu0
        %v543 = vadd.f32 0.0, %v542
        %544 = vmatmul.f32.gmra.mxu0 %v433
        %v545 = vpop.f32.mrf.mxu0
        %v546 = vadd.f32 0.0, %v545
        %547 = vmatmul.f32.gmra.mxu0 %v436
        %v548 = vpop.f32.mrf.mxu0
        %v549 = vadd.f32 0.0, %v548
        %550 = vdwg.mxu0
        %551 = vmatpush.msra.mxu0 0.0
        %552 = vmatpush.msra.mxu0 0.0
        %553 = vmatpush.msra.mxu0 0.0
        %554 = vmatpush.msra.mxu0 0.0
        %555 = vmatpush.msra.mxu0 0.0
        %556 = vmatpush.msra.mxu0 0.0
        %557 = vmatpush.msra.mxu0 0.0
        %558 = vmatpush.msra.mxu0 0.0
        %559 = vmatpush.msra.mxu0 0.0
        %560 = vmatpush.msra.mxu0 0.0
        %561 = vmatpush.msra.mxu0 0.0
        %562 = vmatpush.msra.mxu0 0.0
        %563 = vmatpush.msra.mxu0 0.0
        %564 = vmatpush.msra.mxu0 0.0
        %565 = vmatpush.msra.mxu0 0.0
        %566 = vmatpush.msra.mxu0 %v333
        %567 = vmatmul.f32.gmra.mxu0 %v343
        %v568 = vpop.f32.mrf.mxu0
        %v569 = vadd.f32 0.0, %v568
        %570 = vmatmul.f32.gmra.mxu0 %v346
        %v571 = vpop.f32.mrf.mxu0
        %v572 = vadd.f32 0.0, %v571
        %573 = vmatmul.f32.gmra.mxu0 %v349
        %v574 = vpop.f32.mrf.mxu0
        %v575 = vadd.f32 0.0, %v574
        %576 = vmatmul.f32.gmra.mxu0 %v352
        %v577 = vpop.f32.mrf.mxu0
        %v578 = vadd.f32 0.0, %v577
        %579 = vmatmul.f32.gmra.mxu0 %v355
        %v580 = vpop.f32.mrf.mxu0
        %v581 = vadd.f32 0.0, %v580
        %582 = vmatmul.f32.gmra.mxu0 %v358
        %v583 = vpop.f32.mrf.mxu0
        %v584 = vadd.f32 0.0, %v583
        %585 = vmatmul.f32.gmra.mxu0 %v361
        %v586 = vpop.f32.mrf.mxu0
        %v587 = vadd.f32 0.0, %v586
        %588 = vmatmul.f32.gmra.mxu0 %v364
        %v589 = vpop.f32.mrf.mxu0
        %v590 = vadd.f32 0.0, %v589
        %591 = vmatmul.f32.gmra.mxu0 %v367
        %v592 = vpop.f32.mrf.mxu0
        %v593 = vadd.f32 0.0, %v592
        %594 = vmatmul.f32.gmra.mxu0 %v370
        %v595 = vpop.f32.mrf.mxu0
        %v596 = vadd.f32 0.0, %v595
        %597 = vmatmul.f32.gmra.mxu0 %v373
        %v598 = vpop.f32.mrf.mxu0
        %v599 = vadd.f32 0.0, %v598
        %600 = vmatmul.f32.gmra.mxu0 %v376
        %v601 = vpop.f32.mrf.mxu0
        %v602 = vadd.f32 0.0, %v601
        %603 = vmatmul.f32.gmra.mxu0 %v379
        %v604 = vpop.f32.mrf.mxu0
        %v605 = vadd.f32 0.0, %v604
        %606 = vmatmul.f32.gmra.mxu0 %v382
        %v607 = vpop.f32.mrf.mxu0
        %v608 = vadd.f32 0.0, %v607
        %609 = vmatmul.f32.gmra.mxu0 %v385
        %v610 = vpop.f32.mrf.mxu0
        %v611 = vadd.f32 0.0, %v610
        %612 = vmatmul.f32.gmra.mxu0 %v388
        %v613 = vpop.f32.mrf.mxu0
        %v614 = vadd.f32 0.0, %v613
        %615 = vmatmul.f32.gmra.mxu0 %v391
        %v616 = vpop.f32.mrf.mxu0
        %v617 = vadd.f32 0.0, %v616
        %618 = vmatmul.f32.gmra.mxu0 %v394
        %v619 = vpop.f32.mrf.mxu0
        %v620 = vadd.f32 0.0, %v619
        %621 = vmatmul.f32.gmra.mxu0 %v397
        %v622 = vpop.f32.mrf.mxu0
        %v623 = vadd.f32 0.0, %v622
        %624 = vmatmul.f32.gmra.mxu0 %v400
        %v625 = vpop.f32.mrf.mxu0
        %v626 = vadd.f32 0.0, %v625
        %627 = vmatmul.f32.gmra.mxu0 %v403
        %v628 = vpop.f32.mrf.mxu0
        %v629 = vadd.f32 0.0, %v628
        %630 = vmatmul.f32.gmra.mxu0 %v406
        %v631 = vpop.f32.mrf.mxu0
        %v632 = vadd.f32 0.0, %v631
        %633 = vmatmul.f32.gmra.mxu0 %v409
        %v634 = vpop.f32.mrf.mxu0
        %v635 = vadd.f32 0.0, %v634
        %636 = vmatmul.f32.gmra.mxu0 %v412
        %v637 = vpop.f32.mrf.mxu0
        %v638 = vadd.f32 0.0, %v637
        %639 = vmatmul.f32.gmra.mxu0 %v415
        %v640 = vpop.f32.mrf.mxu0
        %v641 = vadd.f32 0.0, %v640
        %642 = vmatmul.f32.gmra.mxu0 %v418
        %v643 = vpop.f32.mrf.mxu0
        %v644 = vadd.f32 0.0, %v643
        %645 = vmatmul.f32.gmra.mxu0 %v421
        %v646 = vpop.f32.mrf.mxu0
        %v647 = vadd.f32 0.0, %v646
        %648 = vmatmul.f32.gmra.mxu0 %v424
        %v649 = vpop.f32.mrf.mxu0
        %v650 = vadd.f32 0.0, %v649
        %651 = vmatmul.f32.gmra.mxu0 %v427
        %v652 = vpop.f32.mrf.mxu0
        %v653 = vadd.f32 0.0, %v652
        %654 = vmatmul.f32.gmra.mxu0 %v430
        %v655 = vpop.f32.mrf.mxu0
        %v656 = vadd.f32 0.0, %v655
        %657 = vmatmul.f32.gmra.mxu0 %v433
        %v658 = vpop.f32.mrf.mxu0
        %v659 = vadd.f32 0.0, %v658
        %660 = vmatmul.f32.gmra.mxu0 %v436
        %v661 = vpop.f32.mrf.mxu0
        %v662 = vadd.f32 0.0, %v661
        %663 = vdwg.mxu0
        %664 = vmatpush.msra.mxu0 0.0
        %665 = vmatpush.msra.mxu0 0.0
        %666 = vmatpush.msra.mxu0 0.0
        %667 = vmatpush.msra.mxu0 0.0
        %668 = vmatpush.msra.mxu0 0.0
        %669 = vmatpush.msra.mxu0 0.0
        %670 = vmatpush.msra.mxu0 0.0
        %671 = vmatpush.msra.mxu0 0.0
        %672 = vmatpush.msra.mxu0 0.0
        %673 = vmatpush.msra.mxu0 0.0
        %674 = vmatpush.msra.mxu0 0.0
        %675 = vmatpush.msra.mxu0 0.0
        %676 = vmatpush.msra.mxu0 0.0
        %677 = vmatpush.msra.mxu0 0.0
        %678 = vmatpush.msra.mxu0 0.0
        %679 = vmatpush.msra.mxu0 %v334
        %680 = vmatmul.f32.gmra.mxu0 %v343
        %v681 = vpop.f32.mrf.mxu0
        %v682 = vadd.f32 0.0, %v681
        %683 = vmatmul.f32.gmra.mxu0 %v346
        %v684 = vpop.f32.mrf.mxu0
        %v685 = vadd.f32 0.0, %v684
        %686 = vmatmul.f32.gmra.mxu0 %v349
        %v687 = vpop.f32.mrf.mxu0
        %v688 = vadd.f32 0.0, %v687
        %689 = vmatmul.f32.gmra.mxu0 %v352
        %v690 = vpop.f32.mrf.mxu0
        %v691 = vadd.f32 0.0, %v690
        %692 = vmatmul.f32.gmra.mxu0 %v355
        %v693 = vpop.f32.mrf.mxu0
        %v694 = vadd.f32 0.0, %v693
        %695 = vmatmul.f32.gmra.mxu0 %v358
        %v696 = vpop.f32.mrf.mxu0
        %v697 = vadd.f32 0.0, %v696
        %698 = vmatmul.f32.gmra.mxu0 %v361
        %v699 = vpop.f32.mrf.mxu0
        %v700 = vadd.f32 0.0, %v699
        %701 = vmatmul.f32.gmra.mxu0 %v364
        %v702 = vpop.f32.mrf.mxu0
        %v703 = vadd.f32 0.0, %v702
        %704 = vmatmul.f32.gmra.mxu0 %v367
        %v705 = vpop.f32.mrf.mxu0
        %v706 = vadd.f32 0.0, %v705
        %707 = vmatmul.f32.gmra.mxu0 %v370
        %v708 = vpop.f32.mrf.mxu0
        %v709 = vadd.f32 0.0, %v708
        %710 = vmatmul.f32.gmra.mxu0 %v373
        %v711 = vpop.f32.mrf.mxu0
        %v712 = vadd.f32 0.0, %v711
        %713 = vmatmul.f32.gmra.mxu0 %v376
        %v714 = vpop.f32.mrf.mxu0
        %v715 = vadd.f32 0.0, %v714
        %716 = vmatmul.f32.gmra.mxu0 %v379
        %v717 = vpop.f32.mrf.mxu0
        %v718 = vadd.f32 0.0, %v717
        %719 = vmatmul.f32.gmra.mxu0 %v382
        %v720 = vpop.f32.mrf.mxu0
        %v721 = vadd.f32 0.0, %v720
        %722 = vmatmul.f32.gmra.mxu0 %v385
        %v723 = vpop.f32.mrf.mxu0
        %v724 = vadd.f32 0.0, %v723
        %725 = vmatmul.f32.gmra.mxu0 %v388
        %v726 = vpop.f32.mrf.mxu0
        %v727 = vadd.f32 0.0, %v726
        %728 = vmatmul.f32.gmra.mxu0 %v391
        %v729 = vpop.f32.mrf.mxu0
        %v730 = vadd.f32 0.0, %v729
        %731 = vmatmul.f32.gmra.mxu0 %v394
        %v732 = vpop.f32.mrf.mxu0
        %v733 = vadd.f32 0.0, %v732
        %734 = vmatmul.f32.gmra.mxu0 %v397
        %v735 = vpop.f32.mrf.mxu0
        %v736 = vadd.f32 0.0, %v735
        %737 = vmatmul.f32.gmra.mxu0 %v400
        %v738 = vpop.f32.mrf.mxu0
        %v739 = vadd.f32 0.0, %v738
        %740 = vmatmul.f32.gmra.mxu0 %v403
        %v741 = vpop.f32.mrf.mxu0
        %v742 = vadd.f32 0.0, %v741
        %743 = vmatmul.f32.gmra.mxu0 %v406
        %v744 = vpop.f32.mrf.mxu0
        %v745 = vadd.f32 0.0, %v744
        %746 = vmatmul.f32.gmra.mxu0 %v409
        %v747 = vpop.f32.mrf.mxu0
        %v748 = vadd.f32 0.0, %v747
        %749 = vmatmul.f32.gmra.mxu0 %v412
        %v750 = vpop.f32.mrf.mxu0
        %v751 = vadd.f32 0.0, %v750
        %752 = vmatmul.f32.gmra.mxu0 %v415
        %v753 = vpop.f32.mrf.mxu0
        %v754 = vadd.f32 0.0, %v753
        %755 = vmatmul.f32.gmra.mxu0 %v418
        %v756 = vpop.f32.mrf.mxu0
        %v757 = vadd.f32 0.0, %v756
        %758 = vmatmul.f32.gmra.mxu0 %v421
        %v759 = vpop.f32.mrf.mxu0
        %v760 = vadd.f32 0.0, %v759
        %761 = vmatmul.f32.gmra.mxu0 %v424
        %v762 = vpop.f32.mrf.mxu0
        %v763 = vadd.f32 0.0, %v762
        %764 = vmatmul.f32.gmra.mxu0 %v427
        %v765 = vpop.f32.mrf.mxu0
        %v766 = vadd.f32 0.0, %v765
        %767 = vmatmul.f32.gmra.mxu0 %v430
        %v768 = vpop.f32.mrf.mxu0
        %v769 = vadd.f32 0.0, %v768
        %770 = vmatmul.f32.gmra.mxu0 %v433
        %v771 = vpop.f32.mrf.mxu0
        %v772 = vadd.f32 0.0, %v771
        %773 = vmatmul.f32.gmra.mxu0 %v436
        %v774 = vpop.f32.mrf.mxu0
        %v775 = vadd.f32 0.0, %v774
        %776 = vdwg.mxu0
        %777 = vmatpush.msra.mxu0 0.0
        %778 = vmatpush.msra.mxu0 0.0
        %779 = vmatpush.msra.mxu0 0.0
        %780 = vmatpush.msra.mxu0 0.0
        %781 = vmatpush.msra.mxu0 0.0
        %782 = vmatpush.msra.mxu0 0.0
        %783 = vmatpush.msra.mxu0 0.0
        %784 = vmatpush.msra.mxu0 0.0
        %785 = vmatpush.msra.mxu0 0.0
        %786 = vmatpush.msra.mxu0 0.0
        %787 = vmatpush.msra.mxu0 0.0
        %788 = vmatpush.msra.mxu0 0.0
        %789 = vmatpush.msra.mxu0 0.0
        %790 = vmatpush.msra.mxu0 0.0
        %791 = vmatpush.msra.mxu0 0.0
        %792 = vmatpush.msra.mxu0 %v335
        %793 = vmatmul.f32.gmra.mxu0 %v343
        %v794 = vpop.f32.mrf.mxu0
        %v795 = vadd.f32 0.0, %v794
        %796 = vmatmul.f32.gmra.mxu0 %v346
        %v797 = vpop.f32.mrf.mxu0
        %v798 = vadd.f32 0.0, %v797
        %799 = vmatmul.f32.gmra.mxu0 %v349
        %v800 = vpop.f32.mrf.mxu0
        %v801 = vadd.f32 0.0, %v800
        %802 = vmatmul.f32.gmra.mxu0 %v352
        %v803 = vpop.f32.mrf.mxu0
        %v804 = vadd.f32 0.0, %v803
        %805 = vmatmul.f32.gmra.mxu0 %v355
        %v806 = vpop.f32.mrf.mxu0
        %v807 = vadd.f32 0.0, %v806
        %808 = vmatmul.f32.gmra.mxu0 %v358
        %v809 = vpop.f32.mrf.mxu0
        %v810 = vadd.f32 0.0, %v809
        %811 = vmatmul.f32.gmra.mxu0 %v361
        %v812 = vpop.f32.mrf.mxu0
        %v813 = vadd.f32 0.0, %v812
        %814 = vmatmul.f32.gmra.mxu0 %v364
        %v815 = vpop.f32.mrf.mxu0
        %v816 = vadd.f32 0.0, %v815
        %817 = vmatmul.f32.gmra.mxu0 %v367
        %v818 = vpop.f32.mrf.mxu0
        %v819 = vadd.f32 0.0, %v818
        %820 = vmatmul.f32.gmra.mxu0 %v370
        %v821 = vpop.f32.mrf.mxu0
        %v822 = vadd.f32 0.0, %v821
        %823 = vmatmul.f32.gmra.mxu0 %v373
        %v824 = vpop.f32.mrf.mxu0
        %v825 = vadd.f32 0.0, %v824
        %826 = vmatmul.f32.gmra.mxu0 %v376
        %v827 = vpop.f32.mrf.mxu0
        %v828 = vadd.f32 0.0, %v827
        %829 = vmatmul.f32.gmra.mxu0 %v379
        %v830 = vpop.f32.mrf.mxu0
        %v831 = vadd.f32 0.0, %v830
        %832 = vmatmul.f32.gmra.mxu0 %v382
        %v833 = vpop.f32.mrf.mxu0
        %v834 = vadd.f32 0.0, %v833
        %835 = vmatmul.f32.gmra.mxu0 %v385
        %v836 = vpop.f32.mrf.mxu0
        %v837 = vadd.f32 0.0, %v836
        %838 = vmatmul.f32.gmra.mxu0 %v388
        %v839 = vpop.f32.mrf.mxu0
        %v840 = vadd.f32 0.0, %v839
        %841 = vmatmul.f32.gmra.mxu0 %v391
        %v842 = vpop.f32.mrf.mxu0
        %v843 = vadd.f32 0.0, %v842
        %844 = vmatmul.f32.gmra.mxu0 %v394
        %v845 = vpop.f32.mrf.mxu0
        %v846 = vadd.f32 0.0, %v845
        %847 = vmatmul.f32.gmra.mxu0 %v397
        %v848 = vpop.f32.mrf.mxu0
        %v849 = vadd.f32 0.0, %v848
        %850 = vmatmul.f32.gmra.mxu0 %v400
        %v851 = vpop.f32.mrf.mxu0
        %v852 = vadd.f32 0.0, %v851
        %853 = vmatmul.f32.gmra.mxu0 %v403
        %v854 = vpop.f32.mrf.mxu0
        %v855 = vadd.f32 0.0, %v854
        %856 = vmatmul.f32.gmra.mxu0 %v406
        %v857 = vpop.f32.mrf.mxu0
        %v858 = vadd.f32 0.0, %v857
        %859 = vmatmul.f32.gmra.mxu0 %v409
        %v860 = vpop.f32.mrf.mxu0
        %v861 = vadd.f32 0.0, %v860
        %862 = vmatmul.f32.gmra.mxu0 %v412
        %v863 = vpop.f32.mrf.mxu0
        %v864 = vadd.f32 0.0, %v863
        %865 = vmatmul.f32.gmra.mxu0 %v415
        %v866 = vpop.f32.mrf.mxu0
        %v867 = vadd.f32 0.0, %v866
        %868 = vmatmul.f32.gmra.mxu0 %v418
        %v869 = vpop.f32.mrf.mxu0
        %v870 = vadd.f32 0.0, %v869
        %871 = vmatmul.f32.gmra.mxu0 %v421
        %v872 = vpop.f32.mrf.mxu0
        %v873 = vadd.f32 0.0, %v872
        %874 = vmatmul.f32.gmra.mxu0 %v424
        %v875 = vpop.f32.mrf.mxu0
        %v876 = vadd.f32 0.0, %v875
        %877 = vmatmul.f32.gmra.mxu0 %v427
        %v878 = vpop.f32.mrf.mxu0
        %v879 = vadd.f32 0.0, %v878
        %880 = vmatmul.f32.gmra.mxu0 %v430
        %v881 = vpop.f32.mrf.mxu0
        %v882 = vadd.f32 0.0, %v881
        %883 = vmatmul.f32.gmra.mxu0 %v433
        %v884 = vpop.f32.mrf.mxu0
        %v885 = vadd.f32 0.0, %v884
        %886 = vmatmul.f32.gmra.mxu0 %v436
        %v887 = vpop.f32.mrf.mxu0
        %v888 = vadd.f32 0.0, %v887
        %889 = vdwg.mxu0
        %890 = vmatpush.msra.mxu0 0.0
        %891 = vmatpush.msra.mxu0 0.0
        %892 = vmatpush.msra.mxu0 0.0
        %893 = vmatpush.msra.mxu0 0.0
        %894 = vmatpush.msra.mxu0 0.0
        %895 = vmatpush.msra.mxu0 0.0
        %896 = vmatpush.msra.mxu0 0.0
        %897 = vmatpush.msra.mxu0 0.0
        %898 = vmatpush.msra.mxu0 0.0
        %899 = vmatpush.msra.mxu0 0.0
        %900 = vmatpush.msra.mxu0 0.0
        %901 = vmatpush.msra.mxu0 0.0
        %902 = vmatpush.msra.mxu0 0.0
        %903 = vmatpush.msra.mxu0 0.0
        %904 = vmatpush.msra.mxu0 0.0
        %905 = vmatpush.msra.mxu0 %v336
        %906 = vmatmul.f32.gmra.mxu0 %v343
        %v907 = vpop.f32.mrf.mxu0
        %v908 = vadd.f32 0.0, %v907
        %909 = vmatmul.f32.gmra.mxu0 %v346
        %v910 = vpop.f32.mrf.mxu0
        %v911 = vadd.f32 0.0, %v910
        %912 = vmatmul.f32.gmra.mxu0 %v349
        %v913 = vpop.f32.mrf.mxu0
        %v914 = vadd.f32 0.0, %v913
        %915 = vmatmul.f32.gmra.mxu0 %v352
        %v916 = vpop.f32.mrf.mxu0
        %v917 = vadd.f32 0.0, %v916
        %918 = vmatmul.f32.gmra.mxu0 %v355
        %v919 = vpop.f32.mrf.mxu0
        %v920 = vadd.f32 0.0, %v919
        %921 = vmatmul.f32.gmra.mxu0 %v358
        %v922 = vpop.f32.mrf.mxu0
        %v923 = vadd.f32 0.0, %v922
        %924 = vmatmul.f32.gmra.mxu0 %v361
        %v925 = vpop.f32.mrf.mxu0
        %v926 = vadd.f32 0.0, %v925
        %927 = vmatmul.f32.gmra.mxu0 %v364
        %v928 = vpop.f32.mrf.mxu0
        %v929 = vadd.f32 0.0, %v928
        %930 = vmatmul.f32.gmra.mxu0 %v367
        %v931 = vpop.f32.mrf.mxu0
        %v932 = vadd.f32 0.0, %v931
        %933 = vmatmul.f32.gmra.mxu0 %v370
        %v934 = vpop.f32.mrf.mxu0
        %v935 = vadd.f32 0.0, %v934
        %936 = vmatmul.f32.gmra.mxu0 %v373
        %v937 = vpop.f32.mrf.mxu0
        %v938 = vadd.f32 0.0, %v937
        %939 = vmatmul.f32.gmra.mxu0 %v376
        %v940 = vpop.f32.mrf.mxu0
        %v941 = vadd.f32 0.0, %v940
        %942 = vmatmul.f32.gmra.mxu0 %v379
        %v943 = vpop.f32.mrf.mxu0
        %v944 = vadd.f32 0.0, %v943
        %945 = vmatmul.f32.gmra.mxu0 %v382
        %v946 = vpop.f32.mrf.mxu0
        %v947 = vadd.f32 0.0, %v946
        %948 = vmatmul.f32.gmra.mxu0 %v385
        %v949 = vpop.f32.mrf.mxu0
        %v950 = vadd.f32 0.0, %v949
        %951 = vmatmul.f32.gmra.mxu0 %v388
        %v952 = vpop.f32.mrf.mxu0
        %v953 = vadd.f32 0.0, %v952
        %954 = vmatmul.f32.gmra.mxu0 %v391
        %v955 = vpop.f32.mrf.mxu0
        %v956 = vadd.f32 0.0, %v955
        %957 = vmatmul.f32.gmra.mxu0 %v394
        %v958 = vpop.f32.mrf.mxu0
        %v959 = vadd.f32 0.0, %v958
        %960 = vmatmul.f32.gmra.mxu0 %v397
        %v961 = vpop.f32.mrf.mxu0
        %v962 = vadd.f32 0.0, %v961
        %963 = vmatmul.f32.gmra.mxu0 %v400
        %v964 = vpop.f32.mrf.mxu0
        %v965 = vadd.f32 0.0, %v964
        %966 = vmatmul.f32.gmra.mxu0 %v403
        %v967 = vpop.f32.mrf.mxu0
        %v968 = vadd.f32 0.0, %v967
        %969 = vmatmul.f32.gmra.mxu0 %v406
        %v970 = vpop.f32.mrf.mxu0
        %v971 = vadd.f32 0.0, %v970
        %972 = vmatmul.f32.gmra.mxu0 %v409
        %v973 = vpop.f32.mrf.mxu0
        %v974 = vadd.f32 0.0, %v973
        %975 = vmatmul.f32.gmra.mxu0 %v412
        %v976 = vpop.f32.mrf.mxu0
        %v977 = vadd.f32 0.0, %v976
        %978 = vmatmul.f32.gmra.mxu0 %v415
        %v979 = vpop.f32.mrf.mxu0
        %v980 = vadd.f32 0.0, %v979
        %981 = vmatmul.f32.gmra.mxu0 %v418
        %v982 = vpop.f32.mrf.mxu0
        %v983 = vadd.f32 0.0, %v982
        %984 = vmatmul.f32.gmra.mxu0 %v421
        %v985 = vpop.f32.mrf.mxu0
        %v986 = vadd.f32 0.0, %v985
        %987 = vmatmul.f32.gmra.mxu0 %v424
        %v988 = vpop.f32.mrf.mxu0
        %v989 = vadd.f32 0.0, %v988
        %990 = vmatmul.f32.gmra.mxu0 %v427
        %v991 = vpop.f32.mrf.mxu0
        %v992 = vadd.f32 0.0, %v991
        %993 = vmatmul.f32.gmra.mxu0 %v430
        %v994 = vpop.f32.mrf.mxu0
        %v995 = vadd.f32 0.0, %v994
        %996 = vmatmul.f32.gmra.mxu0 %v433
        %v997 = vpop.f32.mrf.mxu0
        %v998 = vadd.f32 0.0, %v997
        %999 = vmatmul.f32.gmra.mxu0 %v436
        %v1000 = vpop.f32.mrf.mxu0
        %v1001 = vadd.f32 0.0, %v1000
        %1002 = vdwg.mxu0
        %1003 = vmatpush.msra.mxu0 0.0
        %1004 = vmatpush.msra.mxu0 0.0
        %1005 = vmatpush.msra.mxu0 0.0
        %1006 = vmatpush.msra.mxu0 0.0
        %1007 = vmatpush.msra.mxu0 0.0
        %1008 = vmatpush.msra.mxu0 0.0
        %1009 = vmatpush.msra.mxu0 0.0
        %1010 = vmatpush.msra.mxu0 0.0
        %1011 = vmatpush.msra.mxu0 0.0
        %1012 = vmatpush.msra.mxu0 0.0
        %1013 = vmatpush.msra.mxu0 0.0
        %1014 = vmatpush.msra.mxu0 0.0
        %1015 = vmatpush.msra.mxu0 0.0
        %1016 = vmatpush.msra.mxu0 0.0
        %1017 = vmatpush.msra.mxu0 0.0
        %1018 = vmatpush.msra.mxu0 %v337
        %1019 = vmatmul.f32.gmra.mxu0 %v343
        %v1020 = vpop.f32.mrf.mxu0
        %v1021 = vadd.f32 0.0, %v1020
        %1022 = vmatmul.f32.gmra.mxu0 %v346
        %v1023 = vpop.f32.mrf.mxu0
        %v1024 = vadd.f32 0.0, %v1023
        %1025 = vmatmul.f32.gmra.mxu0 %v349
        %v1026 = vpop.f32.mrf.mxu0
        %v1027 = vadd.f32 0.0, %v1026
        %1028 = vmatmul.f32.gmra.mxu0 %v352
        %v1029 = vpop.f32.mrf.mxu0
        %v1030 = vadd.f32 0.0, %v1029
        %1031 = vmatmul.f32.gmra.mxu0 %v355
        %v1032 = vpop.f32.mrf.mxu0
        %v1033 = vadd.f32 0.0, %v1032
        %1034 = vmatmul.f32.gmra.mxu0 %v358
        %v1035 = vpop.f32.mrf.mxu0
        %v1036 = vadd.f32 0.0, %v1035
        %1037 = vmatmul.f32.gmra.mxu0 %v361
        %v1038 = vpop.f32.mrf.mxu0
        %v1039 = vadd.f32 0.0, %v1038
        %1040 = vmatmul.f32.gmra.mxu0 %v364
        %v1041 = vpop.f32.mrf.mxu0
        %v1042 = vadd.f32 0.0, %v1041
        %1043 = vmatmul.f32.gmra.mxu0 %v367
        %v1044 = vpop.f32.mrf.mxu0
        %v1045 = vadd.f32 0.0, %v1044
        %1046 = vmatmul.f32.gmra.mxu0 %v370
        %v1047 = vpop.f32.mrf.mxu0
        %v1048 = vadd.f32 0.0, %v1047
        %1049 = vmatmul.f32.gmra.mxu0 %v373
        %v1050 = vpop.f32.mrf.mxu0
        %v1051 = vadd.f32 0.0, %v1050
        %1052 = vmatmul.f32.gmra.mxu0 %v376
        %v1053 = vpop.f32.mrf.mxu0
        %v1054 = vadd.f32 0.0, %v1053
        %1055 = vmatmul.f32.gmra.mxu0 %v379
        %v1056 = vpop.f32.mrf.mxu0
        %v1057 = vadd.f32 0.0, %v1056
        %1058 = vmatmul.f32.gmra.mxu0 %v382
        %v1059 = vpop.f32.mrf.mxu0
        %v1060 = vadd.f32 0.0, %v1059
        %1061 = vmatmul.f32.gmra.mxu0 %v385
        %v1062 = vpop.f32.mrf.mxu0
        %v1063 = vadd.f32 0.0, %v1062
        %1064 = vmatmul.f32.gmra.mxu0 %v388
        %v1065 = vpop.f32.mrf.mxu0
        %v1066 = vadd.f32 0.0, %v1065
        %1067 = vmatmul.f32.gmra.mxu0 %v391
        %v1068 = vpop.f32.mrf.mxu0
        %v1069 = vadd.f32 0.0, %v1068
        %1070 = vmatmul.f32.gmra.mxu0 %v394
        %v1071 = vpop.f32.mrf.mxu0
        %v1072 = vadd.f32 0.0, %v1071
        %1073 = vmatmul.f32.gmra.mxu0 %v397
        %v1074 = vpop.f32.mrf.mxu0
        %v1075 = vadd.f32 0.0, %v1074
        %1076 = vmatmul.f32.gmra.mxu0 %v400
        %v1077 = vpop.f32.mrf.mxu0
        %v1078 = vadd.f32 0.0, %v1077
        %1079 = vmatmul.f32.gmra.mxu0 %v403
        %v1080 = vpop.f32.mrf.mxu0
        %v1081 = vadd.f32 0.0, %v1080
        %1082 = vmatmul.f32.gmra.mxu0 %v406
        %v1083 = vpop.f32.mrf.mxu0
        %v1084 = vadd.f32 0.0, %v1083
        %1085 = vmatmul.f32.gmra.mxu0 %v409
        %v1086 = vpop.f32.mrf.mxu0
        %v1087 = vadd.f32 0.0, %v1086
        %1088 = vmatmul.f32.gmra.mxu0 %v412
        %v1089 = vpop.f32.mrf.mxu0
        %v1090 = vadd.f32 0.0, %v1089
        %1091 = vmatmul.f32.gmra.mxu0 %v415
        %v1092 = vpop.f32.mrf.mxu0
        %v1093 = vadd.f32 0.0, %v1092
        %1094 = vmatmul.f32.gmra.mxu0 %v418
        %v1095 = vpop.f32.mrf.mxu0
        %v1096 = vadd.f32 0.0, %v1095
        %1097 = vmatmul.f32.gmra.mxu0 %v421
        %v1098 = vpop.f32.mrf.mxu0
        %v1099 = vadd.f32 0.0, %v1098
        %1100 = vmatmul.f32.gmra.mxu0 %v424
        %v1101 = vpop.f32.mrf.mxu0
        %v1102 = vadd.f32 0.0, %v1101
        %1103 = vmatmul.f32.gmra.mxu0 %v427
        %v1104 = vpop.f32.mrf.mxu0
        %v1105 = vadd.f32 0.0, %v1104
        %1106 = vmatmul.f32.gmra.mxu0 %v430
        %v1107 = vpop.f32.mrf.mxu0
        %v1108 = vadd.f32 0.0, %v1107
        %1109 = vmatmul.f32.gmra.mxu0 %v433
        %v1110 = vpop.f32.mrf.mxu0
        %v1111 = vadd.f32 0.0, %v1110
        %1112 = vmatmul.f32.gmra.mxu0 %v436
        %v1113 = vpop.f32.mrf.mxu0
        %v1114 = vadd.f32 0.0, %v1113
        %1115 = vdwg.mxu0
        %1116 = vmatpush.msra.mxu0 0.0
        %1117 = vmatpush.msra.mxu0 0.0
        %1118 = vmatpush.msra.mxu0 0.0
        %1119 = vmatpush.msra.mxu0 0.0
        %1120 = vmatpush.msra.mxu0 0.0
        %1121 = vmatpush.msra.mxu0 0.0
        %1122 = vmatpush.msra.mxu0 0.0
        %1123 = vmatpush.msra.mxu0 0.0
        %1124 = vmatpush.msra.mxu0 0.0
        %1125 = vmatpush.msra.mxu0 0.0
        %1126 = vmatpush.msra.mxu0 0.0
        %1127 = vmatpush.msra.mxu0 0.0
        %1128 = vmatpush.msra.mxu0 0.0
        %1129 = vmatpush.msra.mxu0 0.0
        %1130 = vmatpush.msra.mxu0 0.0
        %1131 = vmatpush.msra.mxu0 %v338
        %1132 = vmatmul.f32.gmra.mxu0 %v343
        %v1133 = vpop.f32.mrf.mxu0
        %v1134 = vadd.f32 0.0, %v1133
        %1135 = vmatmul.f32.gmra.mxu0 %v346
        %v1136 = vpop.f32.mrf.mxu0
        %v1137 = vadd.f32 0.0, %v1136
        %1138 = vmatmul.f32.gmra.mxu0 %v349
        %v1139 = vpop.f32.mrf.mxu0
        %v1140 = vadd.f32 0.0, %v1139
        %1141 = vmatmul.f32.gmra.mxu0 %v352
        %v1142 = vpop.f32.mrf.mxu0
        %v1143 = vadd.f32 0.0, %v1142
        %1144 = vmatmul.f32.gmra.mxu0 %v355
        %v1145 = vpop.f32.mrf.mxu0
        %v1146 = vadd.f32 0.0, %v1145
        %1147 = vmatmul.f32.gmra.mxu0 %v358
        %v1148 = vpop.f32.mrf.mxu0
        %v1149 = vadd.f32 0.0, %v1148
        %1150 = vmatmul.f32.gmra.mxu0 %v361
        %v1151 = vpop.f32.mrf.mxu0
        %v1152 = vadd.f32 0.0, %v1151
        %1153 = vmatmul.f32.gmra.mxu0 %v364
        %v1154 = vpop.f32.mrf.mxu0
        %v1155 = vadd.f32 0.0, %v1154
        %1156 = vmatmul.f32.gmra.mxu0 %v367
        %v1157 = vpop.f32.mrf.mxu0
        %v1158 = vadd.f32 0.0, %v1157
        %1159 = vmatmul.f32.gmra.mxu0 %v370
        %v1160 = vpop.f32.mrf.mxu0
        %v1161 = vadd.f32 0.0, %v1160
        %1162 = vmatmul.f32.gmra.mxu0 %v373
        %v1163 = vpop.f32.mrf.mxu0
        %v1164 = vadd.f32 0.0, %v1163
        %1165 = vmatmul.f32.gmra.mxu0 %v376
        %v1166 = vpop.f32.mrf.mxu0
        %v1167 = vadd.f32 0.0, %v1166
        %1168 = vmatmul.f32.gmra.mxu0 %v379
        %v1169 = vpop.f32.mrf.mxu0
        %v1170 = vadd.f32 0.0, %v1169
        %1171 = vmatmul.f32.gmra.mxu0 %v382
        %v1172 = vpop.f32.mrf.mxu0
        %v1173 = vadd.f32 0.0, %v1172
        %1174 = vmatmul.f32.gmra.mxu0 %v385
        %v1175 = vpop.f32.mrf.mxu0
        %v1176 = vadd.f32 0.0, %v1175
        %1177 = vmatmul.f32.gmra.mxu0 %v388
        %v1178 = vpop.f32.mrf.mxu0
        %v1179 = vadd.f32 0.0, %v1178
        %1180 = vmatmul.f32.gmra.mxu0 %v391
        %v1181 = vpop.f32.mrf.mxu0
        %v1182 = vadd.f32 0.0, %v1181
        %1183 = vmatmul.f32.gmra.mxu0 %v394
        %v1184 = vpop.f32.mrf.mxu0
        %v1185 = vadd.f32 0.0, %v1184
        %1186 = vmatmul.f32.gmra.mxu0 %v397
        %v1187 = vpop.f32.mrf.mxu0
        %v1188 = vadd.f32 0.0, %v1187
        %1189 = vmatmul.f32.gmra.mxu0 %v400
        %v1190 = vpop.f32.mrf.mxu0
        %v1191 = vadd.f32 0.0, %v1190
        %1192 = vmatmul.f32.gmra.mxu0 %v403
        %v1193 = vpop.f32.mrf.mxu0
        %v1194 = vadd.f32 0.0, %v1193
        %1195 = vmatmul.f32.gmra.mxu0 %v406
        %v1196 = vpop.f32.mrf.mxu0
        %v1197 = vadd.f32 0.0, %v1196
        %1198 = vmatmul.f32.gmra.mxu0 %v409
        %v1199 = vpop.f32.mrf.mxu0
        %v1200 = vadd.f32 0.0, %v1199
        %1201 = vmatmul.f32.gmra.mxu0 %v412
        %v1202 = vpop.f32.mrf.mxu0
        %v1203 = vadd.f32 0.0, %v1202
        %1204 = vmatmul.f32.gmra.mxu0 %v415
        %v1205 = vpop.f32.mrf.mxu0
        %v1206 = vadd.f32 0.0, %v1205
        %1207 = vmatmul.f32.gmra.mxu0 %v418
        %v1208 = vpop.f32.mrf.mxu0
        %v1209 = vadd.f32 0.0, %v1208
        %1210 = vmatmul.f32.gmra.mxu0 %v421
        %v1211 = vpop.f32.mrf.mxu0
        %v1212 = vadd.f32 0.0, %v1211
        %1213 = vmatmul.f32.gmra.mxu0 %v424
        %v1214 = vpop.f32.mrf.mxu0
        %v1215 = vadd.f32 0.0, %v1214
        %1216 = vmatmul.f32.gmra.mxu0 %v427
        %v1217 = vpop.f32.mrf.mxu0
        %v1218 = vadd.f32 0.0, %v1217
        %1219 = vmatmul.f32.gmra.mxu0 %v430
        %v1220 = vpop.f32.mrf.mxu0
        %v1221 = vadd.f32 0.0, %v1220
        %1222 = vmatmul.f32.gmra.mxu0 %v433
        %v1223 = vpop.f32.mrf.mxu0
        %v1224 = vadd.f32 0.0, %v1223
        %1225 = vmatmul.f32.gmra.mxu0 %v436
        %v1226 = vpop.f32.mrf.mxu0
        %v1227 = vadd.f32 0.0, %v1226
        %1228 = vdwg.mxu0
        %1229 = vmatpush.msra.mxu0 0.0
        %1230 = vmatpush.msra.mxu0 0.0
        %1231 = vmatpush.msra.mxu0 0.0
        %1232 = vmatpush.msra.mxu0 0.0
        %1233 = vmatpush.msra.mxu0 0.0
        %1234 = vmatpush.msra.mxu0 0.0
        %1235 = vmatpush.msra.mxu0 0.0
        %1236 = vmatpush.msra.mxu0 0.0
        %1237 = vmatpush.msra.mxu0 0.0
        %1238 = vmatpush.msra.mxu0 0.0
        %1239 = vmatpush.msra.mxu0 0.0
        %1240 = vmatpush.msra.mxu0 0.0
        %1241 = vmatpush.msra.mxu0 0.0
        %1242 = vmatpush.msra.mxu0 0.0
        %1243 = vmatpush.msra.mxu0 0.0
        %1244 = vmatpush.msra.mxu0 %v339
        %1245 = vmatmul.f32.gmra.mxu0 %v343
        %v1246 = vpop.f32.mrf.mxu0
        %v1247 = vadd.f32 0.0, %v1246
        %1248 = vmatmul.f32.gmra.mxu0 %v346
        %v1249 = vpop.f32.mrf.mxu0
        %v1250 = vadd.f32 0.0, %v1249
        %1251 = vmatmul.f32.gmra.mxu0 %v349
        %v1252 = vpop.f32.mrf.mxu0
        %v1253 = vadd.f32 0.0, %v1252
        %1254 = vmatmul.f32.gmra.mxu0 %v352
        %v1255 = vpop.f32.mrf.mxu0
        %v1256 = vadd.f32 0.0, %v1255
        %1257 = vmatmul.f32.gmra.mxu0 %v355
        %v1258 = vpop.f32.mrf.mxu0
        %v1259 = vadd.f32 0.0, %v1258
        %1260 = vmatmul.f32.gmra.mxu0 %v358
        %v1261 = vpop.f32.mrf.mxu0
        %v1262 = vadd.f32 0.0, %v1261
        %1263 = vmatmul.f32.gmra.mxu0 %v361
        %v1264 = vpop.f32.mrf.mxu0
        %v1265 = vadd.f32 0.0, %v1264
        %1266 = vmatmul.f32.gmra.mxu0 %v364
        %v1267 = vpop.f32.mrf.mxu0
        %v1268 = vadd.f32 0.0, %v1267
        %1269 = vmatmul.f32.gmra.mxu0 %v367
        %v1270 = vpop.f32.mrf.mxu0
        %v1271 = vadd.f32 0.0, %v1270
        %1272 = vmatmul.f32.gmra.mxu0 %v370
        %v1273 = vpop.f32.mrf.mxu0
        %v1274 = vadd.f32 0.0, %v1273
        %1275 = vmatmul.f32.gmra.mxu0 %v373
        %v1276 = vpop.f32.mrf.mxu0
        %v1277 = vadd.f32 0.0, %v1276
        %1278 = vmatmul.f32.gmra.mxu0 %v376
        %v1279 = vpop.f32.mrf.mxu0
        %v1280 = vadd.f32 0.0, %v1279
        %1281 = vmatmul.f32.gmra.mxu0 %v379
        %v1282 = vpop.f32.mrf.mxu0
        %v1283 = vadd.f32 0.0, %v1282
        %1284 = vmatmul.f32.gmra.mxu0 %v382
        %v1285 = vpop.f32.mrf.mxu0
        %v1286 = vadd.f32 0.0, %v1285
        %1287 = vmatmul.f32.gmra.mxu0 %v385
        %v1288 = vpop.f32.mrf.mxu0
        %v1289 = vadd.f32 0.0, %v1288
        %1290 = vmatmul.f32.gmra.mxu0 %v388
        %v1291 = vpop.f32.mrf.mxu0
        %v1292 = vadd.f32 0.0, %v1291
        %1293 = vmatmul.f32.gmra.mxu0 %v391
        %v1294 = vpop.f32.mrf.mxu0
        %v1295 = vadd.f32 0.0, %v1294
        %1296 = vmatmul.f32.gmra.mxu0 %v394
        %v1297 = vpop.f32.mrf.mxu0
        %v1298 = vadd.f32 0.0, %v1297
        %1299 = vmatmul.f32.gmra.mxu0 %v397
        %v1300 = vpop.f32.mrf.mxu0
        %v1301 = vadd.f32 0.0, %v1300
        %1302 = vmatmul.f32.gmra.mxu0 %v400
        %v1303 = vpop.f32.mrf.mxu0
        %v1304 = vadd.f32 0.0, %v1303
        %1305 = vmatmul.f32.gmra.mxu0 %v403
        %v1306 = vpop.f32.mrf.mxu0
        %v1307 = vadd.f32 0.0, %v1306
        %1308 = vmatmul.f32.gmra.mxu0 %v406
        %v1309 = vpop.f32.mrf.mxu0
        %v1310 = vadd.f32 0.0, %v1309
        %1311 = vmatmul.f32.gmra.mxu0 %v409
        %v1312 = vpop.f32.mrf.mxu0
        %v1313 = vadd.f32 0.0, %v1312
        %1314 = vmatmul.f32.gmra.mxu0 %v412
        %v1315 = vpop.f32.mrf.mxu0
        %v1316 = vadd.f32 0.0, %v1315
        %1317 = vmatmul.f32.gmra.mxu0 %v415
        %v1318 = vpop.f32.mrf.mxu0
        %v1319 = vadd.f32 0.0, %v1318
        %1320 = vmatmul.f32.gmra.mxu0 %v418
        %v1321 = vpop.f32.mrf.mxu0
        %v1322 = vadd.f32 0.0, %v1321
        %1323 = vmatmul.f32.gmra.mxu0 %v421
        %v1324 = vpop.f32.mrf.mxu0
        %v1325 = vadd.f32 0.0, %v1324
        %1326 = vmatmul.f32.gmra.mxu0 %v424
        %v1327 = vpop.f32.mrf.mxu0
        %v1328 = vadd.f32 0.0, %v1327
        %1329 = vmatmul.f32.gmra.mxu0 %v427
        %v1330 = vpop.f32.mrf.mxu0
        %v1331 = vadd.f32 0.0, %v1330
        %1332 = vmatmul.f32.gmra.mxu0 %v430
        %v1333 = vpop.f32.mrf.mxu0
        %v1334 = vadd.f32 0.0, %v1333
        %1335 = vmatmul.f32.gmra.mxu0 %v433
        %v1336 = vpop.f32.mrf.mxu0
        %v1337 = vadd.f32 0.0, %v1336
        %1338 = vmatmul.f32.gmra.mxu0 %v436
        %v1339 = vpop.f32.mrf.mxu0
        %v1340 = vadd.f32 0.0, %v1339
        %1341 = vdwg.mxu0
        %1342 = vmatpush.msra.mxu0 0.0
        %1343 = vmatpush.msra.mxu0 0.0
        %1344 = vmatpush.msra.mxu0 0.0
        %1345 = vmatpush.msra.mxu0 0.0
        %1346 = vmatpush.msra.mxu0 0.0
        %1347 = vmatpush.msra.mxu0 0.0
        %1348 = vmatpush.msra.mxu0 0.0
        %1349 = vmatpush.msra.mxu0 0.0
        %1350 = vmatpush.msra.mxu0 0.0
        %1351 = vmatpush.msra.mxu0 0.0
        %1352 = vmatpush.msra.mxu0 0.0
        %1353 = vmatpush.msra.mxu0 0.0
        %1354 = vmatpush.msra.mxu0 0.0
        %1355 = vmatpush.msra.mxu0 0.0
        %1356 = vmatpush.msra.mxu0 0.0
        %1357 = vmatpush.msra.mxu0 %v340
        %1358 = vmatmul.f32.gmra.mxu0 %v343
        %v1359 = vpop.f32.mrf.mxu0
        %v1360 = vadd.f32 0.0, %v1359
        %1361 = vmatmul.f32.gmra.mxu0 %v346
        %v1362 = vpop.f32.mrf.mxu0
        %v1363 = vadd.f32 0.0, %v1362
        %1364 = vmatmul.f32.gmra.mxu0 %v349
        %v1365 = vpop.f32.mrf.mxu0
        %v1366 = vadd.f32 0.0, %v1365
        %1367 = vmatmul.f32.gmra.mxu0 %v352
        %v1368 = vpop.f32.mrf.mxu0
        %v1369 = vadd.f32 0.0, %v1368
        %1370 = vmatmul.f32.gmra.mxu0 %v355
        %v1371 = vpop.f32.mrf.mxu0
        %v1372 = vadd.f32 0.0, %v1371
        %1373 = vmatmul.f32.gmra.mxu0 %v358
        %v1374 = vpop.f32.mrf.mxu0
        %v1375 = vadd.f32 0.0, %v1374
        %1376 = vmatmul.f32.gmra.mxu0 %v361
        %v1377 = vpop.f32.mrf.mxu0
        %v1378 = vadd.f32 0.0, %v1377
        %1379 = vmatmul.f32.gmra.mxu0 %v364
        %v1380 = vpop.f32.mrf.mxu0
        %v1381 = vadd.f32 0.0, %v1380
        %1382 = vmatmul.f32.gmra.mxu0 %v367
        %v1383 = vpop.f32.mrf.mxu0
        %v1384 = vadd.f32 0.0, %v1383
        %1385 = vmatmul.f32.gmra.mxu0 %v370
        %v1386 = vpop.f32.mrf.mxu0
        %v1387 = vadd.f32 0.0, %v1386
        %1388 = vmatmul.f32.gmra.mxu0 %v373
        %v1389 = vpop.f32.mrf.mxu0
        %v1390 = vadd.f32 0.0, %v1389
        %1391 = vmatmul.f32.gmra.mxu0 %v376
        %v1392 = vpop.f32.mrf.mxu0
        %v1393 = vadd.f32 0.0, %v1392
        %1394 = vmatmul.f32.gmra.mxu0 %v379
        %v1395 = vpop.f32.mrf.mxu0
        %v1396 = vadd.f32 0.0, %v1395
        %1397 = vmatmul.f32.gmra.mxu0 %v382
        %v1398 = vpop.f32.mrf.mxu0
        %v1399 = vadd.f32 0.0, %v1398
        %1400 = vmatmul.f32.gmra.mxu0 %v385
        %v1401 = vpop.f32.mrf.mxu0
        %v1402 = vadd.f32 0.0, %v1401
        %1403 = vmatmul.f32.gmra.mxu0 %v388
        %v1404 = vpop.f32.mrf.mxu0
        %v1405 = vadd.f32 0.0, %v1404
        %1406 = vmatmul.f32.gmra.mxu0 %v391
        %v1407 = vpop.f32.mrf.mxu0
        %v1408 = vadd.f32 0.0, %v1407
        %1409 = vmatmul.f32.gmra.mxu0 %v394
        %v1410 = vpop.f32.mrf.mxu0
        %v1411 = vadd.f32 0.0, %v1410
        %1412 = vmatmul.f32.gmra.mxu0 %v397
        %v1413 = vpop.f32.mrf.mxu0
        %v1414 = vadd.f32 0.0, %v1413
        %1415 = vmatmul.f32.gmra.mxu0 %v400
        %v1416 = vpop.f32.mrf.mxu0
        %v1417 = vadd.f32 0.0, %v1416
        %1418 = vmatmul.f32.gmra.mxu0 %v403
        %v1419 = vpop.f32.mrf.mxu0
        %v1420 = vadd.f32 0.0, %v1419
        %1421 = vmatmul.f32.gmra.mxu0 %v406
        %v1422 = vpop.f32.mrf.mxu0
        %v1423 = vadd.f32 0.0, %v1422
        %1424 = vmatmul.f32.gmra.mxu0 %v409
        %v1425 = vpop.f32.mrf.mxu0
        %v1426 = vadd.f32 0.0, %v1425
        %1427 = vmatmul.f32.gmra.mxu0 %v412
        %v1428 = vpop.f32.mrf.mxu0
        %v1429 = vadd.f32 0.0, %v1428
        %1430 = vmatmul.f32.gmra.mxu0 %v415
        %v1431 = vpop.f32.mrf.mxu0
        %v1432 = vadd.f32 0.0, %v1431
        %1433 = vmatmul.f32.gmra.mxu0 %v418
        %v1434 = vpop.f32.mrf.mxu0
        %v1435 = vadd.f32 0.0, %v1434
        %1436 = vmatmul.f32.gmra.mxu0 %v421
        %v1437 = vpop.f32.mrf.mxu0
        %v1438 = vadd.f32 0.0, %v1437
        %1439 = vmatmul.f32.gmra.mxu0 %v424
        %v1440 = vpop.f32.mrf.mxu0
        %v1441 = vadd.f32 0.0, %v1440
        %1442 = vmatmul.f32.gmra.mxu0 %v427
        %v1443 = vpop.f32.mrf.mxu0
        %v1444 = vadd.f32 0.0, %v1443
        %1445 = vmatmul.f32.gmra.mxu0 %v430
        %v1446 = vpop.f32.mrf.mxu0
        %v1447 = vadd.f32 0.0, %v1446
        %1448 = vmatmul.f32.gmra.mxu0 %v433
        %v1449 = vpop.f32.mrf.mxu0
        %v1450 = vadd.f32 0.0, %v1449
        %1451 = vmatmul.f32.gmra.mxu0 %v436
        %v1452 = vpop.f32.mrf.mxu0
        %v1453 = vadd.f32 0.0, %v1452
        %1454 = vdwg.mxu0
        %s1455 = scalar_lea.vmem [#allocation2], 384
        %1456 = vst [vmem:[%s1455] sm:$0xff] 0.0
        %1457 = vst [vmem:[%s1455 + $0x8] sm:$0xff] 0.0
        %1458 = vst [vmem:[%s1455 + $0x10] sm:$0x3] 0.0
        %1459 = vst [vmem:[%s1455 + $0x18] sm:$0xff] 0.0
        %1460 = vst [vmem:[%s1455 + $0x20] sm:$0xff] 0.0
        %1461 = vst [vmem:[%s1455 + $0x28] sm:$0x3] 0.0
        %1462 = vst [vmem:[#allocation2 + $0x10] sm:$0x3] 0.0
        %1463 = vst [vmem:[#allocation2 + $0x28] sm:$0x3] 0.0
        %1464 = vst [vmem:[#allocation2 + $0x40] sm:$0x3] 0.0
        %1465 = vst [vmem:[#allocation2 + $0x58] sm:$0x3] 0.0
        %1466 = vst [vmem:[#allocation2 + $0x70] sm:$0x3] 0.0
        %1467 = vst [vmem:[#allocation2 + $0x88] sm:$0x3] 0.0
        %1468 = vst [vmem:[#allocation2 + $0xa0] sm:$0x3] 0.0
        %1469 = vst [vmem:[#allocation2 + $0xb8] sm:$0x3] 0.0
        %1470 = vst [vmem:[#allocation2 + $0xd0] sm:$0x3] 0.0
        %1471 = vst [vmem:[#allocation2 + $0xe8] sm:$0x3] 0.0
        %1472 = vst [vmem:[#allocation2 + $0x100] sm:$0x3] 0.0
        %1473 = vst [vmem:[#allocation2 + $0x118] sm:$0x3] 0.0
        %1474 = vst [vmem:[#allocation2 + $0x130] sm:$0x3] 0.0
        %1475 = vst [vmem:[#allocation2 + $0x148] sm:$0x3] 0.0
        %1476 = vst [vmem:[#allocation2 + $0x160] sm:$0x3] 0.0
        %1477 = vst [vmem:[#allocation2 + $0x178] sm:$0x3] 0.0
        %1478 = vst [vmem:[#allocation2] sm:$0xff] %v456
        %1479 = vst [vmem:[#allocation2 + $0x8] sm:$0xff] %v459
        %1480 = vst [vmem:[#allocation2 + $0x18] sm:$0xff] %v462
        %1481 = vst [vmem:[#allocation2 + $0x20] sm:$0xff] %v465
        %1482 = vst [vmem:[#allocation2 + $0x30] sm:$0xff] %v468
        %1483 = vst [vmem:[#allocation2 + $0x38] sm:$0xff] %v471
        %1484 = vst [vmem:[#allocation2 + $0x48] sm:$0xff] %v474
        %1485 = vst [vmem:[#allocation2 + $0x50] sm:$0xff] %v477
        %1486 = vst [vmem:[#allocation2 + $0x60] sm:$0xff] %v480
        %1487 = vst [vmem:[#allocation2 + $0x68] sm:$0xff] %v483
        %1488 = vst [vmem:[#allocation2 + $0x78] sm:$0xff] %v486
        %1489 = vst [vmem:[#allocation2 + $0x80] sm:$0xff] %v489
        %1490 = vst [vmem:[#allocation2 + $0x90] sm:$0xff] %v492
        %1491 = vst [vmem:[#allocation2 + $0x98] sm:$0xff] %v495
        %1492 = vst [vmem:[#allocation2 + $0xa8] sm:$0xff] %v498
        %1493 = vst [vmem:[#allocation2 + $0xb0] sm:$0xff] %v501
        %1494 = vst [vmem:[#allocation2 + $0xc0] sm:$0xff] %v504
        %1495 = vst [vmem:[#allocation2 + $0xc8] sm:$0xff] %v507
        %1496 = vst [vmem:[#allocation2 + $0xd8] sm:$0xff] %v510
        %1497 = vst [vmem:[#allocation2 + $0xe0] sm:$0xff] %v513
        %1498 = vst [vmem:[#allocation2 + $0xf0] sm:$0xff] %v516
        %1499 = vst [vmem:[#allocation2 + $0xf8] sm:$0xff] %v519
        %1500 = vst [vmem:[#allocation2 + $0x108] sm:$0xff] %v522
        %1501 = vst [vmem:[#allocation2 + $0x110] sm:$0xff] %v525
        %1502 = vst [vmem:[#allocation2 + $0x120] sm:$0xff] %v528
        %1503 = vst [vmem:[#allocation2 + $0x128] sm:$0xff] %v531
        %1504 = vst [vmem:[#allocation2 + $0x138] sm:$0xff] %v534
        %1505 = vst [vmem:[#allocation2 + $0x140] sm:$0xff] %v537
        %1506 = vst [vmem:[#allocation2 + $0x150] sm:$0xff] %v540
        %1507 = vst [vmem:[#allocation2 + $0x158] sm:$0xff] %v543
        %1508 = vst [vmem:[#allocation2 + $0x168] sm:$0xff] %v546
        %1509 = vst [vmem:[#allocation2 + $0x170] sm:$0xff] %v549
        %v1510 = vld [vmem:[#allocation2 + $0x1] sm:$0xff]
        %v1511 = vld [vmem:[#allocation2 + $0x9] sm:$0xff]
        %v1512 = vld [vmem:[#allocation2 + $0x19] sm:$0xff]
        %v1513 = vld [vmem:[#allocation2 + $0x21] sm:$0xff]
        %v1514 = vld [vmem:[#allocation2 + $0x31] sm:$0xff]
        %v1515 = vld [vmem:[#allocation2 + $0x39] sm:$0xff]
        %v1516 = vld [vmem:[#allocation2 + $0x49] sm:$0xff]
        %v1517 = vld [vmem:[#allocation2 + $0x51] sm:$0xff]
        %v1518 = vld [vmem:[#allocation2 + $0x61] sm:$0xff]
        %v1519 = vld [vmem:[#allocation2 + $0x69] sm:$0xff]
        %v1520 = vld [vmem:[#allocation2 + $0x79] sm:$0xff]
        %v1521 = vld [vmem:[#allocation2 + $0x81] sm:$0xff]
        %v1522 = vld [vmem:[#allocation2 + $0x91] sm:$0xff]
        %v1523 = vld [vmem:[#allocation2 + $0x99] sm:$0xff]
        %v1524 = vld [vmem:[#allocation2 + $0xa9] sm:$0xff]
        %v1525 = vld [vmem:[#allocation2 + $0xb1] sm:$0xff]
        %v1526 = vld [vmem:[#allocation2 + $0xc1] sm:$0xff]
        %v1527 = vld [vmem:[#allocation2 + $0xc9] sm:$0xff]
        %v1528 = vld [vmem:[#allocation2 + $0xd9] sm:$0xff]
        %v1529 = vld [vmem:[#allocation2 + $0xe1] sm:$0xff]
        %v1530 = vld [vmem:[#allocation2 + $0xf1] sm:$0xff]
        %v1531 = vld [vmem:[#allocation2 + $0xf9] sm:$0xff]
        %v1532 = vld [vmem:[#allocation2 + $0x109] sm:$0xff]
        %v1533 = vld [vmem:[#allocation2 + $0x111] sm:$0xff]
        %v1534 = vld [vmem:[#allocation2 + $0x121] sm:$0xff]
        %v1535 = vld [vmem:[#allocation2 + $0x129] sm:$0xff]
        %v1536 = vld [vmem:[#allocation2 + $0x139] sm:$0xff]
        %v1537 = vld [vmem:[#allocation2 + $0x141] sm:$0xff]
        %v1538 = vld [vmem:[#allocation2 + $0x151] sm:$0xff]
        %v1539 = vld [vmem:[#allocation2 + $0x159] sm:$0xff]
        %v1540 = vld [vmem:[#allocation2 + $0x169] sm:$0xff]
        %v1541 = vld [vmem:[#allocation2 + $0x171] sm:$0xff]
        %v1542 = vadd.f32 %v1510, %v569
        %v1543 = vadd.f32 %v1511, %v572
        %v1544 = vadd.f32 %v1512, %v575
        %v1545 = vadd.f32 %v1513, %v578
        %v1546 = vadd.f32 %v1514, %v581
        %v1547 = vadd.f32 %v1515, %v584
        %v1548 = vadd.f32 %v1516, %v587
        %v1549 = vadd.f32 %v1517, %v590
        %v1550 = vadd.f32 %v1518, %v593
        %v1551 = vadd.f32 %v1519, %v596
        %v1552 = vadd.f32 %v1520, %v599
        %v1553 = vadd.f32 %v1521, %v602
        %v1554 = vadd.f32 %v1522, %v605
        %v1555 = vadd.f32 %v1523, %v608
        %v1556 = vadd.f32 %v1524, %v611
        %v1557 = vadd.f32 %v1525, %v614
        %v1558 = vadd.f32 %v1526, %v617
        %v1559 = vadd.f32 %v1527, %v620
        %v1560 = vadd.f32 %v1528, %v623
        %v1561 = vadd.f32 %v1529, %v626
        %v1562 = vadd.f32 %v1530, %v629
        %v1563 = vadd.f32 %v1531, %v632
        %v1564 = vadd.f32 %v1532, %v635
        %v1565 = vadd.f32 %v1533, %v638
        %v1566 = vadd.f32 %v1534, %v641
        %v1567 = vadd.f32 %v1535, %v644
        %v1568 = vadd.f32 %v1536, %v647
        %v1569 = vadd.f32 %v1537, %v650
        %v1570 = vadd.f32 %v1538, %v653
        %v1571 = vadd.f32 %v1539, %v656
        %v1572 = vadd.f32 %v1540, %v659
        %v1573 = vadd.f32 %v1541, %v662
        %1574 = vst [vmem:[#allocation2 + $0x1] sm:$0xff] %v1542
        %1575 = vst [vmem:[#allocation2 + $0x9] sm:$0xff] %v1543
        %1576 = vst [vmem:[#allocation2 + $0x19] sm:$0xff] %v1544
        %1577 = vst [vmem:[#allocation2 + $0x21] sm:$0xff] %v1545
        %1578 = vst [vmem:[#allocation2 + $0x31] sm:$0xff] %v1546
        %1579 = vst [vmem:[#allocation2 + $0x39] sm:$0xff] %v1547
        %1580 = vst [vmem:[#allocation2 + $0x49] sm:$0xff] %v1548
        %1581 = vst [vmem:[#allocation2 + $0x51] sm:$0xff] %v1549
        %1582 = vst [vmem:[#allocation2 + $0x61] sm:$0xff] %v1550
        %1583 = vst [vmem:[#allocation2 + $0x69] sm:$0xff] %v1551
        %1584 = vst [vmem:[#allocation2 + $0x79] sm:$0xff] %v1552
        %1585 = vst [vmem:[#allocation2 + $0x81] sm:$0xff] %v1553
        %1586 = vst [vmem:[#allocation2 + $0x91] sm:$0xff] %v1554
        %1587 = vst [vmem:[#allocation2 + $0x99] sm:$0xff] %v1555
        %1588 = vst [vmem:[#allocation2 + $0xa9] sm:$0xff] %v1556
        %1589 = vst [vmem:[#allocation2 + $0xb1] sm:$0xff] %v1557
        %1590 = vst [vmem:[#allocation2 + $0xc1] sm:$0xff] %v1558
        %1591 = vst [vmem:[#allocation2 + $0xc9] sm:$0xff] %v1559
        %1592 = vst [vmem:[#allocation2 + $0xd9] sm:$0xff] %v1560
        %1593 = vst [vmem:[#allocation2 + $0xe1] sm:$0xff] %v1561
        %1594 = vst [vmem:[#allocation2 + $0xf1] sm:$0xff] %v1562
        %1595 = vst [vmem:[#allocation2 + $0xf9] sm:$0xff] %v1563
        %1596 = vst [vmem:[#allocation2 + $0x109] sm:$0xff] %v1564
        %1597 = vst [vmem:[#allocation2 + $0x111] sm:$0xff] %v1565
        %1598 = vst [vmem:[#allocation2 + $0x121] sm:$0xff] %v1566
        %1599 = vst [vmem:[#allocation2 + $0x129] sm:$0xff] %v1567
        %1600 = vst [vmem:[#allocation2 + $0x139] sm:$0xff] %v1568
        %1601 = vst [vmem:[#allocation2 + $0x141] sm:$0xff] %v1569
        %1602 = vst [vmem:[#allocation2 + $0x151] sm:$0xff] %v1570
        %1603 = vst [vmem:[#allocation2 + $0x159] sm:$0xff] %v1571
        %1604 = vst [vmem:[#allocation2 + $0x169] sm:$0xff] %v1572
        %1605 = vst [vmem:[#allocation2 + $0x171] sm:$0xff] %v1573
        %v1606 = vld [vmem:[#allocation2 + $0x2] sm:$0xff]
        %v1607 = vld [vmem:[#allocation2 + $0xa] sm:$0xff]
        %v1608 = vld [vmem:[#allocation2 + $0x1a] sm:$0xff]
        %v1609 = vld [vmem:[#allocation2 + $0x22] sm:$0xff]
        %v1610 = vld [vmem:[#allocation2 + $0x32] sm:$0xff]
        %v1611 = vld [vmem:[#allocation2 + $0x3a] sm:$0xff]
        %v1612 = vld [vmem:[#allocation2 + $0x4a] sm:$0xff]
        %v1613 = vld [vmem:[#allocation2 + $0x52] sm:$0xff]
        %v1614 = vld [vmem:[#allocation2 + $0x62] sm:$0xff]
        %v1615 = vld [vmem:[#allocation2 + $0x6a] sm:$0xff]
        %v1616 = vld [vmem:[#allocation2 + $0x7a] sm:$0xff]
        %v1617 = vld [vmem:[#allocation2 + $0x82] sm:$0xff]
        %v1618 = vld [vmem:[#allocation2 + $0x92] sm:$0xff]
        %v1619 = vld [vmem:[#allocation2 + $0x9a] sm:$0xff]
        %v1620 = vld [vmem:[#allocation2 + $0xaa] sm:$0xff]
        %v1621 = vld [vmem:[#allocation2 + $0xb2] sm:$0xff]
        %v1622 = vld [vmem:[#allocation2 + $0xc2] sm:$0xff]
        %v1623 = vld [vmem:[#allocation2 + $0xca] sm:$0xff]
        %v1624 = vld [vmem:[#allocation2 + $0xda] sm:$0xff]
        %v1625 = vld [vmem:[#allocation2 + $0xe2] sm:$0xff]
        %v1626 = vld [vmem:[#allocation2 + $0xf2] sm:$0xff]
        %v1627 = vld [vmem:[#allocation2 + $0xfa] sm:$0xff]
        %v1628 = vld [vmem:[#allocation2 + $0x10a] sm:$0xff]
        %v1629 = vld [vmem:[#allocation2 + $0x112] sm:$0xff]
        %v1630 = vld [vmem:[#allocation2 + $0x122] sm:$0xff]
        %v1631 = vld [vmem:[#allocation2 + $0x12a] sm:$0xff]
        %v1632 = vld [vmem:[#allocation2 + $0x13a] sm:$0xff]
        %v1633 = vld [vmem:[#allocation2 + $0x142] sm:$0xff]
        %v1634 = vld [vmem:[#allocation2 + $0x152] sm:$0xff]
        %v1635 = vld [vmem:[#allocation2 + $0x15a] sm:$0xff]
        %v1636 = vld [vmem:[#allocation2 + $0x16a] sm:$0xff]
        %v1637 = vld [vmem:[#allocation2 + $0x172] sm:$0xff]
        %v1638 = vadd.f32 %v1606, %v682
        %v1639 = vadd.f32 %v1607, %v685
        %v1640 = vadd.f32 %v1608, %v688
        %v1641 = vadd.f32 %v1609, %v691
        %v1642 = vadd.f32 %v1610, %v694
        %v1643 = vadd.f32 %v1611, %v697
        %v1644 = vadd.f32 %v1612, %v700
        %v1645 = vadd.f32 %v1613, %v703
        %v1646 = vadd.f32 %v1614, %v706
        %v1647 = vadd.f32 %v1615, %v709
        %v1648 = vadd.f32 %v1616, %v712
        %v1649 = vadd.f32 %v1617, %v715
        %v1650 = vadd.f32 %v1618, %v718
        %v1651 = vadd.f32 %v1619, %v721
        %v1652 = vadd.f32 %v1620, %v724
        %v1653 = vadd.f32 %v1621, %v727
        %v1654 = vadd.f32 %v1622, %v730
        %v1655 = vadd.f32 %v1623, %v733
        %v1656 = vadd.f32 %v1624, %v736
        %v1657 = vadd.f32 %v1625, %v739
        %v1658 = vadd.f32 %v1626, %v742
        %v1659 = vadd.f32 %v1627, %v745
        %v1660 = vadd.f32 %v1628, %v748
        %v1661 = vadd.f32 %v1629, %v751
        %v1662 = vadd.f32 %v1630, %v754
        %v1663 = vadd.f32 %v1631, %v757
        %v1664 = vadd.f32 %v1632, %v760
        %v1665 = vadd.f32 %v1633, %v763
        %v1666 = vadd.f32 %v1634, %v766
        %v1667 = vadd.f32 %v1635, %v769
        %v1668 = vadd.f32 %v1636, %v772
        %v1669 = vadd.f32 %v1637, %v775
        %1670 = vst [vmem:[#allocation2 + $0x2] sm:$0xff] %v1638
        %1671 = vst [vmem:[#allocation2 + $0xa] sm:$0xff] %v1639
        %1672 = vst [vmem:[#allocation2 + $0x1a] sm:$0xff] %v1640
        %1673 = vst [vmem:[#allocation2 + $0x22] sm:$0xff] %v1641
        %1674 = vst [vmem:[#allocation2 + $0x32] sm:$0xff] %v1642
        %1675 = vst [vmem:[#allocation2 + $0x3a] sm:$0xff] %v1643
        %1676 = vst [vmem:[#allocation2 + $0x4a] sm:$0xff] %v1644
        %1677 = vst [vmem:[#allocation2 + $0x52] sm:$0xff] %v1645
        %1678 = vst [vmem:[#allocation2 + $0x62] sm:$0xff] %v1646
        %1679 = vst [vmem:[#allocation2 + $0x6a] sm:$0xff] %v1647
        %1680 = vst [vmem:[#allocation2 + $0x7a] sm:$0xff] %v1648
        %1681 = vst [vmem:[#allocation2 + $0x82] sm:$0xff] %v1649
        %1682 = vst [vmem:[#allocation2 + $0x92] sm:$0xff] %v1650
        %1683 = vst [vmem:[#allocation2 + $0x9a] sm:$0xff] %v1651
        %1684 = vst [vmem:[#allocation2 + $0xaa] sm:$0xff] %v1652
        %1685 = vst [vmem:[#allocation2 + $0xb2] sm:$0xff] %v1653
        %1686 = vst [vmem:[#allocation2 + $0xc2] sm:$0xff] %v1654
        %1687 = vst [vmem:[#allocation2 + $0xca] sm:$0xff] %v1655
        %1688 = vst [vmem:[#allocation2 + $0xda] sm:$0xff] %v1656
        %1689 = vst [vmem:[#allocation2 + $0xe2] sm:$0xff] %v1657
        %1690 = vst [vmem:[#allocation2 + $0xf2] sm:$0xff] %v1658
        %1691 = vst [vmem:[#allocation2 + $0xfa] sm:$0xff] %v1659
        %1692 = vst [vmem:[#allocation2 + $0x10a] sm:$0xff] %v1660
        %1693 = vst [vmem:[#allocation2 + $0x112] sm:$0xff] %v1661
        %1694 = vst [vmem:[#allocation2 + $0x122] sm:$0xff] %v1662
        %1695 = vst [vmem:[#allocation2 + $0x12a] sm:$0xff] %v1663
        %1696 = vst [vmem:[#allocation2 + $0x13a] sm:$0xff] %v1664
        %1697 = vst [vmem:[#allocation2 + $0x142] sm:$0xff] %v1665
        %1698 = vst [vmem:[#allocation2 + $0x152] sm:$0xff] %v1666
        %1699 = vst [vmem:[#allocation2 + $0x15a] sm:$0xff] %v1667
        %1700 = vst [vmem:[#allocation2 + $0x16a] sm:$0xff] %v1668
        %1701 = vst [vmem:[#allocation2 + $0x172] sm:$0xff] %v1669
        %s1702 = scalar_lea.vmem [#allocation2], 24
        %v1703 = vld [vmem:[%s1702] sm:$0xff]
        %v1704 = vld [vmem:[%s1702 + $0x8] sm:$0xff]
        %v1705 = vld [vmem:[%s1702 + $0x18] sm:$0xff]
        %v1706 = vld [vmem:[%s1702 + $0x20] sm:$0xff]
        %v1707 = vld [vmem:[%s1702 + $0x30] sm:$0xff]
        %v1708 = vld [vmem:[%s1702 + $0x38] sm:$0xff]
        %v1709 = vld [vmem:[%s1702 + $0x48] sm:$0xff]
        %v1710 = vld [vmem:[%s1702 + $0x50] sm:$0xff]
        %v1711 = vld [vmem:[%s1702 + $0x60] sm:$0xff]
        %v1712 = vld [vmem:[%s1702 + $0x68] sm:$0xff]
        %v1713 = vld [vmem:[%s1702 + $0x78] sm:$0xff]
        %v1714 = vld [vmem:[%s1702 + $0x80] sm:$0xff]
        %v1715 = vld [vmem:[%s1702 + $0x90] sm:$0xff]
        %v1716 = vld [vmem:[%s1702 + $0x98] sm:$0xff]
        %v1717 = vld [vmem:[%s1702 + $0xa8] sm:$0xff]
        %v1718 = vld [vmem:[%s1702 + $0xb0] sm:$0xff]
        %v1719 = vld [vmem:[%s1702 + $0xc0] sm:$0xff]
        %v1720 = vld [vmem:[%s1702 + $0xc8] sm:$0xff]
        %v1721 = vld [vmem:[%s1702 + $0xd8] sm:$0xff]
        %v1722 = vld [vmem:[%s1702 + $0xe0] sm:$0xff]
        %v1723 = vld [vmem:[%s1702 + $0xf0] sm:$0xff]
        %v1724 = vld [vmem:[%s1702 + $0xf8] sm:$0xff]
        %v1725 = vld [vmem:[%s1702 + $0x108] sm:$0xff]
        %v1726 = vld [vmem:[%s1702 + $0x110] sm:$0xff]
        %v1727 = vld [vmem:[%s1702 + $0x120] sm:$0xff]
        %v1728 = vld [vmem:[%s1702 + $0x128] sm:$0xff]
        %v1729 = vld [vmem:[%s1702 + $0x138] sm:$0xff]
        %v1730 = vld [vmem:[%s1702 + $0x140] sm:$0xff]
        %v1731 = vld [vmem:[%s1702 + $0x150] sm:$0xff]
        %v1732 = vld [vmem:[%s1702 + $0x158] sm:$0xff]
        %v1733 = vld [vmem:[%s1702 + $0x168] sm:$0xff]
        %v1734 = vld [vmem:[%s1702 + $0x170] sm:$0xff]
        %v1735 = vadd.f32 %v1703, %v795
        %v1736 = vadd.f32 %v1704, %v798
        %v1737 = vadd.f32 %v1705, %v801
        %v1738 = vadd.f32 %v1706, %v804
        %v1739 = vadd.f32 %v1707, %v807
        %v1740 = vadd.f32 %v1708, %v810
        %v1741 = vadd.f32 %v1709, %v813
        %v1742 = vadd.f32 %v1710, %v816
        %v1743 = vadd.f32 %v1711, %v819
        %v1744 = vadd.f32 %v1712, %v822
        %v1745 = vadd.f32 %v1713, %v825
        %v1746 = vadd.f32 %v1714, %v828
        %v1747 = vadd.f32 %v1715, %v831
        %v1748 = vadd.f32 %v1716, %v834
        %v1749 = vadd.f32 %v1717, %v837
        %v1750 = vadd.f32 %v1718, %v840
        %v1751 = vadd.f32 %v1719, %v843
        %v1752 = vadd.f32 %v1720, %v846
        %v1753 = vadd.f32 %v1721, %v849
        %v1754 = vadd.f32 %v1722, %v852
        %v1755 = vadd.f32 %v1723, %v855
        %v1756 = vadd.f32 %v1724, %v858
        %v1757 = vadd.f32 %v1725, %v861
        %v1758 = vadd.f32 %v1726, %v864
        %v1759 = vadd.f32 %v1727, %v867
        %v1760 = vadd.f32 %v1728, %v870
        %v1761 = vadd.f32 %v1729, %v873
        %v1762 = vadd.f32 %v1730, %v876
        %v1763 = vadd.f32 %v1731, %v879
        %v1764 = vadd.f32 %v1732, %v882
        %v1765 = vadd.f32 %v1733, %v885
        %v1766 = vadd.f32 %v1734, %v888
        %1767 = vst [vmem:[%s1702] sm:$0xff] %v1735
        %1768 = vst [vmem:[%s1702 + $0x8] sm:$0xff] %v1736
        %1769 = vst [vmem:[%s1702 + $0x18] sm:$0xff] %v1737
        %1770 = vst [vmem:[%s1702 + $0x20] sm:$0xff] %v1738
        %1771 = vst [vmem:[%s1702 + $0x30] sm:$0xff] %v1739
        %1772 = vst [vmem:[%s1702 + $0x38] sm:$0xff] %v1740
        %1773 = vst [vmem:[%s1702 + $0x48] sm:$0xff] %v1741
        %1774 = vst [vmem:[%s1702 + $0x50] sm:$0xff] %v1742
        %1775 = vst [vmem:[%s1702 + $0x60] sm:$0xff] %v1743
        %1776 = vst [vmem:[%s1702 + $0x68] sm:$0xff] %v1744
        %1777 = vst [vmem:[%s1702 + $0x78] sm:$0xff] %v1745
        %1778 = vst [vmem:[%s1702 + $0x80] sm:$0xff] %v1746
        %1779 = vst [vmem:[%s1702 + $0x90] sm:$0xff] %v1747
        %1780 = vst [vmem:[%s1702 + $0x98] sm:$0xff] %v1748
        %1781 = vst [vmem:[%s1702 + $0xa8] sm:$0xff] %v1749
        %1782 = vst [vmem:[%s1702 + $0xb0] sm:$0xff] %v1750
        %1783 = vst [vmem:[%s1702 + $0xc0] sm:$0xff] %v1751
        %1784 = vst [vmem:[%s1702 + $0xc8] sm:$0xff] %v1752
        %1785 = vst [vmem:[%s1702 + $0xd8] sm:$0xff] %v1753
        %1786 = vst [vmem:[%s1702 + $0xe0] sm:$0xff] %v1754
        %1787 = vst [vmem:[%s1702 + $0xf0] sm:$0xff] %v1755
        %1788 = vst [vmem:[%s1702 + $0xf8] sm:$0xff] %v1756
        %1789 = vst [vmem:[%s1702 + $0x108] sm:$0xff] %v1757
        %1790 = vst [vmem:[%s1702 + $0x110] sm:$0xff] %v1758
        %1791 = vst [vmem:[%s1702 + $0x120] sm:$0xff] %v1759
        %1792 = vst [vmem:[%s1702 + $0x128] sm:$0xff] %v1760
        %1793 = vst [vmem:[%s1702 + $0x138] sm:$0xff] %v1761
        %1794 = vst [vmem:[%s1702 + $0x140] sm:$0xff] %v1762
        %1795 = vst [vmem:[%s1702 + $0x150] sm:$0xff] %v1763
        %1796 = vst [vmem:[%s1702 + $0x158] sm:$0xff] %v1764
        %1797 = vst [vmem:[%s1702 + $0x168] sm:$0xff] %v1765
        %1798 = vst [vmem:[%s1702 + $0x170] sm:$0xff] %v1766
        %v1799 = vld [vmem:[%s1702 + $0x1] sm:$0xff]
        %v1800 = vld [vmem:[%s1702 + $0x9] sm:$0xff]
        %v1801 = vld [vmem:[%s1702 + $0x19] sm:$0xff]
        %v1802 = vld [vmem:[%s1702 + $0x21] sm:$0xff]
        %v1803 = vld [vmem:[%s1702 + $0x31] sm:$0xff]
        %v1804 = vld [vmem:[%s1702 + $0x39] sm:$0xff]
        %v1805 = vld [vmem:[%s1702 + $0x49] sm:$0xff]
        %v1806 = vld [vmem:[%s1702 + $0x51] sm:$0xff]
        %v1807 = vld [vmem:[%s1702 + $0x61] sm:$0xff]
        %v1808 = vld [vmem:[%s1702 + $0x69] sm:$0xff]
        %v1809 = vld [vmem:[%s1702 + $0x79] sm:$0xff]
        %v1810 = vld [vmem:[%s1702 + $0x81] sm:$0xff]
        %v1811 = vld [vmem:[%s1702 + $0x91] sm:$0xff]
        %v1812 = vld [vmem:[%s1702 + $0x99] sm:$0xff]
        %v1813 = vld [vmem:[%s1702 + $0xa9] sm:$0xff]
        %v1814 = vld [vmem:[%s1702 + $0xb1] sm:$0xff]
        %v1815 = vld [vmem:[%s1702 + $0xc1] sm:$0xff]
        %v1816 = vld [vmem:[%s1702 + $0xc9] sm:$0xff]
        %v1817 = vld [vmem:[%s1702 + $0xd9] sm:$0xff]
        %v1818 = vld [vmem:[%s1702 + $0xe1] sm:$0xff]
        %v1819 = vld [vmem:[%s1702 + $0xf1] sm:$0xff]
        %v1820 = vld [vmem:[%s1702 + $0xf9] sm:$0xff]
        %v1821 = vld [vmem:[%s1702 + $0x109] sm:$0xff]
        %v1822 = vld [vmem:[%s1702 + $0x111] sm:$0xff]
        %v1823 = vld [vmem:[%s1702 + $0x121] sm:$0xff]
        %v1824 = vld [vmem:[%s1702 + $0x129] sm:$0xff]
        %v1825 = vld [vmem:[%s1702 + $0x139] sm:$0xff]
        %v1826 = vld [vmem:[%s1702 + $0x141] sm:$0xff]
        %v1827 = vld [vmem:[%s1702 + $0x151] sm:$0xff]
        %v1828 = vld [vmem:[%s1702 + $0x159] sm:$0xff]
        %v1829 = vld [vmem:[%s1702 + $0x169] sm:$0xff]
        %v1830 = vld [vmem:[%s1702 + $0x171] sm:$0xff]
        %v1831 = vadd.f32 %v1799, %v908
        %v1832 = vadd.f32 %v1800, %v911
        %v1833 = vadd.f32 %v1801, %v914
        %v1834 = vadd.f32 %v1802, %v917
        %v1835 = vadd.f32 %v1803, %v920
        %v1836 = vadd.f32 %v1804, %v923
        %v1837 = vadd.f32 %v1805, %v926
        %v1838 = vadd.f32 %v1806, %v929
        %v1839 = vadd.f32 %v1807, %v932
        %v1840 = vadd.f32 %v1808, %v935
        %v1841 = vadd.f32 %v1809, %v938
        %v1842 = vadd.f32 %v1810, %v941
        %v1843 = vadd.f32 %v1811, %v944
        %v1844 = vadd.f32 %v1812, %v947
        %v1845 = vadd.f32 %v1813, %v950
        %v1846 = vadd.f32 %v1814, %v953
        %v1847 = vadd.f32 %v1815, %v956
        %v1848 = vadd.f32 %v1816, %v959
        %v1849 = vadd.f32 %v1817, %v962
        %v1850 = vadd.f32 %v1818, %v965
        %v1851 = vadd.f32 %v1819, %v968
        %v1852 = vadd.f32 %v1820, %v971
        %v1853 = vadd.f32 %v1821, %v974
        %v1854 = vadd.f32 %v1822, %v977
        %v1855 = vadd.f32 %v1823, %v980
        %v1856 = vadd.f32 %v1824, %v983
        %v1857 = vadd.f32 %v1825, %v986
        %v1858 = vadd.f32 %v1826, %v989
        %v1859 = vadd.f32 %v1827, %v992
        %v1860 = vadd.f32 %v1828, %v995
        %v1861 = vadd.f32 %v1829, %v998
        %v1862 = vadd.f32 %v1830, %v1001
        %1863 = vst [vmem:[%s1702 + $0x1] sm:$0xff] %v1831
        %1864 = vst [vmem:[%s1702 + $0x9] sm:$0xff] %v1832
        %1865 = vst [vmem:[%s1702 + $0x19] sm:$0xff] %v1833
        %1866 = vst [vmem:[%s1702 + $0x21] sm:$0xff] %v1834
        %1867 = vst [vmem:[%s1702 + $0x31] sm:$0xff] %v1835
        %1868 = vst [vmem:[%s1702 + $0x39] sm:$0xff] %v1836
        %1869 = vst [vmem:[%s1702 + $0x49] sm:$0xff] %v1837
        %1870 = vst [vmem:[%s1702 + $0x51] sm:$0xff] %v1838
        %1871 = vst [vmem:[%s1702 + $0x61] sm:$0xff] %v1839
        %1872 = vst [vmem:[%s1702 + $0x69] sm:$0xff] %v1840
        %1873 = vst [vmem:[%s1702 + $0x79] sm:$0xff] %v1841
        %1874 = vst [vmem:[%s1702 + $0x81] sm:$0xff] %v1842
        %1875 = vst [vmem:[%s1702 + $0x91] sm:$0xff] %v1843
        %1876 = vst [vmem:[%s1702 + $0x99] sm:$0xff] %v1844
        %1877 = vst [vmem:[%s1702 + $0xa9] sm:$0xff] %v1845
        %1878 = vst [vmem:[%s1702 + $0xb1] sm:$0xff] %v1846
        %1879 = vst [vmem:[%s1702 + $0xc1] sm:$0xff] %v1847
        %1880 = vst [vmem:[%s1702 + $0xc9] sm:$0xff] %v1848
        %1881 = vst [vmem:[%s1702 + $0xd9] sm:$0xff] %v1849
        %1882 = vst [vmem:[%s1702 + $0xe1] sm:$0xff] %v1850
        %1883 = vst [vmem:[%s1702 + $0xf1] sm:$0xff] %v1851
        %1884 = vst [vmem:[%s1702 + $0xf9] sm:$0xff] %v1852
        %1885 = vst [vmem:[%s1702 + $0x109] sm:$0xff] %v1853
        %1886 = vst [vmem:[%s1702 + $0x111] sm:$0xff] %v1854
        %1887 = vst [vmem:[%s1702 + $0x121] sm:$0xff] %v1855
        %1888 = vst [vmem:[%s1702 + $0x129] sm:$0xff] %v1856
        %1889 = vst [vmem:[%s1702 + $0x139] sm:$0xff] %v1857
        %1890 = vst [vmem:[%s1702 + $0x141] sm:$0xff] %v1858
        %1891 = vst [vmem:[%s1702 + $0x151] sm:$0xff] %v1859
        %1892 = vst [vmem:[%s1702 + $0x159] sm:$0xff] %v1860
        %1893 = vst [vmem:[%s1702 + $0x169] sm:$0xff] %v1861
        %1894 = vst [vmem:[%s1702 + $0x171] sm:$0xff] %v1862
        %v1895 = vld [vmem:[%s1702 + $0x2] sm:$0xff]
        %v1896 = vld [vmem:[%s1702 + $0xa] sm:$0xff]
        %v1897 = vld [vmem:[%s1702 + $0x1a] sm:$0xff]
        %v1898 = vld [vmem:[%s1702 + $0x22] sm:$0xff]
        %v1899 = vld [vmem:[%s1702 + $0x32] sm:$0xff]
        %v1900 = vld [vmem:[%s1702 + $0x3a] sm:$0xff]
        %v1901 = vld [vmem:[%s1702 + $0x4a] sm:$0xff]
        %v1902 = vld [vmem:[%s1702 + $0x52] sm:$0xff]
        %v1903 = vld [vmem:[%s1702 + $0x62] sm:$0xff]
        %v1904 = vld [vmem:[%s1702 + $0x6a] sm:$0xff]
        %v1905 = vld [vmem:[%s1702 + $0x7a] sm:$0xff]
        %v1906 = vld [vmem:[%s1702 + $0x82] sm:$0xff]
        %v1907 = vld [vmem:[%s1702 + $0x92] sm:$0xff]
        %v1908 = vld [vmem:[%s1702 + $0x9a] sm:$0xff]
        %v1909 = vld [vmem:[%s1702 + $0xaa] sm:$0xff]
        %v1910 = vld [vmem:[%s1702 + $0xb2] sm:$0xff]
        %v1911 = vld [vmem:[%s1702 + $0xc2] sm:$0xff]
        %v1912 = vld [vmem:[%s1702 + $0xca] sm:$0xff]
        %v1913 = vld [vmem:[%s1702 + $0xda] sm:$0xff]
        %v1914 = vld [vmem:[%s1702 + $0xe2] sm:$0xff]
        %v1915 = vld [vmem:[%s1702 + $0xf2] sm:$0xff]
        %v1916 = vld [vmem:[%s1702 + $0xfa] sm:$0xff]
        %v1917 = vld [vmem:[%s1702 + $0x10a] sm:$0xff]
        %v1918 = vld [vmem:[%s1702 + $0x112] sm:$0xff]
        %v1919 = vld [vmem:[%s1702 + $0x122] sm:$0xff]
        %v1920 = vld [vmem:[%s1702 + $0x12a] sm:$0xff]
        %v1921 = vld [vmem:[%s1702 + $0x13a] sm:$0xff]
        %v1922 = vld [vmem:[%s1702 + $0x142] sm:$0xff]
        %v1923 = vld [vmem:[%s1702 + $0x152] sm:$0xff]
        %v1924 = vld [vmem:[%s1702 + $0x15a] sm:$0xff]
        %v1925 = vld [vmem:[%s1702 + $0x16a] sm:$0xff]
        %v1926 = vld [vmem:[%s1702 + $0x172] sm:$0xff]
        %v1927 = vadd.f32 %v1895, %v1021
        %v1928 = vadd.f32 %v1896, %v1024
        %v1929 = vadd.f32 %v1897, %v1027
        %v1930 = vadd.f32 %v1898, %v1030
        %v1931 = vadd.f32 %v1899, %v1033
        %v1932 = vadd.f32 %v1900, %v1036
        %v1933 = vadd.f32 %v1901, %v1039
        %v1934 = vadd.f32 %v1902, %v1042
        %v1935 = vadd.f32 %v1903, %v1045
        %v1936 = vadd.f32 %v1904, %v1048
        %v1937 = vadd.f32 %v1905, %v1051
        %v1938 = vadd.f32 %v1906, %v1054
        %v1939 = vadd.f32 %v1907, %v1057
        %v1940 = vadd.f32 %v1908, %v1060
        %v1941 = vadd.f32 %v1909, %v1063
        %v1942 = vadd.f32 %v1910, %v1066
        %v1943 = vadd.f32 %v1911, %v1069
        %v1944 = vadd.f32 %v1912, %v1072
        %v1945 = vadd.f32 %v1913, %v1075
        %v1946 = vadd.f32 %v1914, %v1078
        %v1947 = vadd.f32 %v1915, %v1081
        %v1948 = vadd.f32 %v1916, %v1084
        %v1949 = vadd.f32 %v1917, %v1087
        %v1950 = vadd.f32 %v1918, %v1090
        %v1951 = vadd.f32 %v1919, %v1093
        %v1952 = vadd.f32 %v1920, %v1096
        %v1953 = vadd.f32 %v1921, %v1099
        %v1954 = vadd.f32 %v1922, %v1102
        %v1955 = vadd.f32 %v1923, %v1105
        %v1956 = vadd.f32 %v1924, %v1108
        %v1957 = vadd.f32 %v1925, %v1111
        %v1958 = vadd.f32 %v1926, %v1114
        %1959 = vst [vmem:[%s1702 + $0x2] sm:$0xff] %v1927
        %1960 = vst [vmem:[%s1702 + $0xa] sm:$0xff] %v1928
        %1961 = vst [vmem:[%s1702 + $0x1a] sm:$0xff] %v1929
        %1962 = vst [vmem:[%s1702 + $0x22] sm:$0xff] %v1930
        %1963 = vst [vmem:[%s1702 + $0x32] sm:$0xff] %v1931
        %1964 = vst [vmem:[%s1702 + $0x3a] sm:$0xff] %v1932
        %1965 = vst [vmem:[%s1702 + $0x4a] sm:$0xff] %v1933
        %1966 = vst [vmem:[%s1702 + $0x52] sm:$0xff] %v1934
        %1967 = vst [vmem:[%s1702 + $0x62] sm:$0xff] %v1935
        %1968 = vst [vmem:[%s1702 + $0x6a] sm:$0xff] %v1936
        %1969 = vst [vmem:[%s1702 + $0x7a] sm:$0xff] %v1937
        %1970 = vst [vmem:[%s1702 + $0x82] sm:$0xff] %v1938
        %1971 = vst [vmem:[%s1702 + $0x92] sm:$0xff] %v1939
        %1972 = vst [vmem:[%s1702 + $0x9a] sm:$0xff] %v1940
        %1973 = vst [vmem:[%s1702 + $0xaa] sm:$0xff] %v1941
        %1974 = vst [vmem:[%s1702 + $0xb2] sm:$0xff] %v1942
        %1975 = vst [vmem:[%s1702 + $0xc2] sm:$0xff] %v1943
        %1976 = vst [vmem:[%s1702 + $0xca] sm:$0xff] %v1944
        %1977 = vst [vmem:[%s1702 + $0xda] sm:$0xff] %v1945
        %1978 = vst [vmem:[%s1702 + $0xe2] sm:$0xff] %v1946
        %1979 = vst [vmem:[%s1702 + $0xf2] sm:$0xff] %v1947
        %1980 = vst [vmem:[%s1702 + $0xfa] sm:$0xff] %v1948
        %1981 = vst [vmem:[%s1702 + $0x10a] sm:$0xff] %v1949
        %1982 = vst [vmem:[%s1702 + $0x112] sm:$0xff] %v1950
        %1983 = vst [vmem:[%s1702 + $0x122] sm:$0xff] %v1951
        %1984 = vst [vmem:[%s1702 + $0x12a] sm:$0xff] %v1952
        %1985 = vst [vmem:[%s1702 + $0x13a] sm:$0xff] %v1953
        %1986 = vst [vmem:[%s1702 + $0x142] sm:$0xff] %v1954
        %1987 = vst [vmem:[%s1702 + $0x152] sm:$0xff] %v1955
        %1988 = vst [vmem:[%s1702 + $0x15a] sm:$0xff] %v1956
        %1989 = vst [vmem:[%s1702 + $0x16a] sm:$0xff] %v1957
        %1990 = vst [vmem:[%s1702 + $0x172] sm:$0xff] %v1958
        %s1991 = scalar_lea.vmem [#allocation2], 48
        %v1992 = vld [vmem:[%s1991] sm:$0xff]
        %v1993 = vld [vmem:[%s1991 + $0x8] sm:$0xff]
        %v1994 = vld [vmem:[%s1991 + $0x18] sm:$0xff]
        %v1995 = vld [vmem:[%s1991 + $0x20] sm:$0xff]
        %v1996 = vld [vmem:[%s1991 + $0x30] sm:$0xff]
        %v1997 = vld [vmem:[%s1991 + $0x38] sm:$0xff]
        %v1998 = vld [vmem:[%s1991 + $0x48] sm:$0xff]
        %v1999 = vld [vmem:[%s1991 + $0x50] sm:$0xff]
        %v2000 = vld [vmem:[%s1991 + $0x60] sm:$0xff]
        %v2001 = vld [vmem:[%s1991 + $0x68] sm:$0xff]
        %v2002 = vld [vmem:[%s1991 + $0x78] sm:$0xff]
        %v2003 = vld [vmem:[%s1991 + $0x80] sm:$0xff]
        %v2004 = vld [vmem:[%s1991 + $0x90] sm:$0xff]
        %v2005 = vld [vmem:[%s1991 + $0x98] sm:$0xff]
        %v2006 = vld [vmem:[%s1991 + $0xa8] sm:$0xff]
        %v2007 = vld [vmem:[%s1991 + $0xb0] sm:$0xff]
        %v2008 = vld [vmem:[%s1991 + $0xc0] sm:$0xff]
        %v2009 = vld [vmem:[%s1991 + $0xc8] sm:$0xff]
        %v2010 = vld [vmem:[%s1991 + $0xd8] sm:$0xff]
        %v2011 = vld [vmem:[%s1991 + $0xe0] sm:$0xff]
        %v2012 = vld [vmem:[%s1991 + $0xf0] sm:$0xff]
        %v2013 = vld [vmem:[%s1991 + $0xf8] sm:$0xff]
        %v2014 = vld [vmem:[%s1991 + $0x108] sm:$0xff]
        %v2015 = vld [vmem:[%s1991 + $0x110] sm:$0xff]
        %v2016 = vld [vmem:[%s1991 + $0x120] sm:$0xff]
        %v2017 = vld [vmem:[%s1991 + $0x128] sm:$0xff]
        %v2018 = vld [vmem:[%s1991 + $0x138] sm:$0xff]
        %v2019 = vld [vmem:[%s1991 + $0x140] sm:$0xff]
        %v2020 = vld [vmem:[%s1991 + $0x150] sm:$0xff]
        %v2021 = vld [vmem:[%s1991 + $0x158] sm:$0xff]
        %v2022 = vld [vmem:[%s1991 + $0x168] sm:$0xff]
        %v2023 = vld [vmem:[%s1991 + $0x170] sm:$0xff]
        %v2024 = vadd.f32 %v1992, %v1134
        %v2025 = vadd.f32 %v1993, %v1137
        %v2026 = vadd.f32 %v1994, %v1140
        %v2027 = vadd.f32 %v1995, %v1143
        %v2028 = vadd.f32 %v1996, %v1146
        %v2029 = vadd.f32 %v1997, %v1149
        %v2030 = vadd.f32 %v1998, %v1152
        %v2031 = vadd.f32 %v1999, %v1155
        %v2032 = vadd.f32 %v2000, %v1158
        %v2033 = vadd.f32 %v2001, %v1161
        %v2034 = vadd.f32 %v2002, %v1164
        %v2035 = vadd.f32 %v2003, %v1167
        %v2036 = vadd.f32 %v2004, %v1170
        %v2037 = vadd.f32 %v2005, %v1173
        %v2038 = vadd.f32 %v2006, %v1176
        %v2039 = vadd.f32 %v2007, %v1179
        %v2040 = vadd.f32 %v2008, %v1182
        %v2041 = vadd.f32 %v2009, %v1185
        %v2042 = vadd.f32 %v2010, %v1188
        %v2043 = vadd.f32 %v2011, %v1191
        %v2044 = vadd.f32 %v2012, %v1194
        %v2045 = vadd.f32 %v2013, %v1197
        %v2046 = vadd.f32 %v2014, %v1200
        %v2047 = vadd.f32 %v2015, %v1203
        %v2048 = vadd.f32 %v2016, %v1206
        %v2049 = vadd.f32 %v2017, %v1209
        %v2050 = vadd.f32 %v2018, %v1212
        %v2051 = vadd.f32 %v2019, %v1215
        %v2052 = vadd.f32 %v2020, %v1218
        %v2053 = vadd.f32 %v2021, %v1221
        %v2054 = vadd.f32 %v2022, %v1224
        %v2055 = vadd.f32 %v2023, %v1227
        %2056 = vst [vmem:[%s1991] sm:$0xff] %v2024
        %2057 = vst [vmem:[%s1991 + $0x8] sm:$0xff] %v2025
        %2058 = vst [vmem:[%s1991 + $0x18] sm:$0xff] %v2026
        %2059 = vst [vmem:[%s1991 + $0x20] sm:$0xff] %v2027
        %2060 = vst [vmem:[%s1991 + $0x30] sm:$0xff] %v2028
        %2061 = vst [vmem:[%s1991 + $0x38] sm:$0xff] %v2029
        %2062 = vst [vmem:[%s1991 + $0x48] sm:$0xff] %v2030
        %2063 = vst [vmem:[%s1991 + $0x50] sm:$0xff] %v2031
        %2064 = vst [vmem:[%s1991 + $0x60] sm:$0xff] %v2032
        %2065 = vst [vmem:[%s1991 + $0x68] sm:$0xff] %v2033
        %2066 = vst [vmem:[%s1991 + $0x78] sm:$0xff] %v2034
        %2067 = vst [vmem:[%s1991 + $0x80] sm:$0xff] %v2035
        %2068 = vst [vmem:[%s1991 + $0x90] sm:$0xff] %v2036
        %2069 = vst [vmem:[%s1991 + $0x98] sm:$0xff] %v2037
        %2070 = vst [vmem:[%s1991 + $0xa8] sm:$0xff] %v2038
        %2071 = vst [vmem:[%s1991 + $0xb0] sm:$0xff] %v2039
        %2072 = vst [vmem:[%s1991 + $0xc0] sm:$0xff] %v2040
        %2073 = vst [vmem:[%s1991 + $0xc8] sm:$0xff] %v2041
        %2074 = vst [vmem:[%s1991 + $0xd8] sm:$0xff] %v2042
        %2075 = vst [vmem:[%s1991 + $0xe0] sm:$0xff] %v2043
        %2076 = vst [vmem:[%s1991 + $0xf0] sm:$0xff] %v2044
        %2077 = vst [vmem:[%s1991 + $0xf8] sm:$0xff] %v2045
        %2078 = vst [vmem:[%s1991 + $0x108] sm:$0xff] %v2046
        %2079 = vst [vmem:[%s1991 + $0x110] sm:$0xff] %v2047
        %2080 = vst [vmem:[%s1991 + $0x120] sm:$0xff] %v2048
        %2081 = vst [vmem:[%s1991 + $0x128] sm:$0xff] %v2049
        %2082 = vst [vmem:[%s1991 + $0x138] sm:$0xff] %v2050
        %2083 = vst [vmem:[%s1991 + $0x140] sm:$0xff] %v2051
        %2084 = vst [vmem:[%s1991 + $0x150] sm:$0xff] %v2052
        %2085 = vst [vmem:[%s1991 + $0x158] sm:$0xff] %v2053
        %2086 = vst [vmem:[%s1991 + $0x168] sm:$0xff] %v2054
        %2087 = vst [vmem:[%s1991 + $0x170] sm:$0xff] %v2055
        %v2088 = vld [vmem:[%s1991 + $0x1] sm:$0xff]
        %v2089 = vld [vmem:[%s1991 + $0x9] sm:$0xff]
        %v2090 = vld [vmem:[%s1991 + $0x19] sm:$0xff]
        %v2091 = vld [vmem:[%s1991 + $0x21] sm:$0xff]
        %v2092 = vld [vmem:[%s1991 + $0x31] sm:$0xff]
        %v2093 = vld [vmem:[%s1991 + $0x39] sm:$0xff]
        %v2094 = vld [vmem:[%s1991 + $0x49] sm:$0xff]
        %v2095 = vld [vmem:[%s1991 + $0x51] sm:$0xff]
        %v2096 = vld [vmem:[%s1991 + $0x61] sm:$0xff]
        %v2097 = vld [vmem:[%s1991 + $0x69] sm:$0xff]
        %v2098 = vld [vmem:[%s1991 + $0x79] sm:$0xff]
        %v2099 = vld [vmem:[%s1991 + $0x81] sm:$0xff]
        %v2100 = vld [vmem:[%s1991 + $0x91] sm:$0xff]
        %v2101 = vld [vmem:[%s1991 + $0x99] sm:$0xff]
        %v2102 = vld [vmem:[%s1991 + $0xa9] sm:$0xff]
        %v2103 = vld [vmem:[%s1991 + $0xb1] sm:$0xff]
        %v2104 = vld [vmem:[%s1991 + $0xc1] sm:$0xff]
        %v2105 = vld [vmem:[%s1991 + $0xc9] sm:$0xff]
        %v2106 = vld [vmem:[%s1991 + $0xd9] sm:$0xff]
        %v2107 = vld [vmem:[%s1991 + $0xe1] sm:$0xff]
        %v2108 = vld [vmem:[%s1991 + $0xf1] sm:$0xff]
        %v2109 = vld [vmem:[%s1991 + $0xf9] sm:$0xff]
        %v2110 = vld [vmem:[%s1991 + $0x109] sm:$0xff]
        %v2111 = vld [vmem:[%s1991 + $0x111] sm:$0xff]
        %v2112 = vld [vmem:[%s1991 + $0x121] sm:$0xff]
        %v2113 = vld [vmem:[%s1991 + $0x129] sm:$0xff]
        %v2114 = vld [vmem:[%s1991 + $0x139] sm:$0xff]
        %v2115 = vld [vmem:[%s1991 + $0x141] sm:$0xff]
        %v2116 = vld [vmem:[%s1991 + $0x151] sm:$0xff]
        %v2117 = vld [vmem:[%s1991 + $0x159] sm:$0xff]
        %v2118 = vld [vmem:[%s1991 + $0x169] sm:$0xff]
        %v2119 = vld [vmem:[%s1991 + $0x171] sm:$0xff]
        %v2120 = vadd.f32 %v2088, %v1247
        %v2121 = vadd.f32 %v2089, %v1250
        %v2122 = vadd.f32 %v2090, %v1253
        %v2123 = vadd.f32 %v2091, %v1256
        %v2124 = vadd.f32 %v2092, %v1259
        %v2125 = vadd.f32 %v2093, %v1262
        %v2126 = vadd.f32 %v2094, %v1265
        %v2127 = vadd.f32 %v2095, %v1268
        %v2128 = vadd.f32 %v2096, %v1271
        %v2129 = vadd.f32 %v2097, %v1274
        %v2130 = vadd.f32 %v2098, %v1277
        %v2131 = vadd.f32 %v2099, %v1280
        %v2132 = vadd.f32 %v2100, %v1283
        %v2133 = vadd.f32 %v2101, %v1286
        %v2134 = vadd.f32 %v2102, %v1289
        %v2135 = vadd.f32 %v2103, %v1292
        %v2136 = vadd.f32 %v2104, %v1295
        %v2137 = vadd.f32 %v2105, %v1298
        %v2138 = vadd.f32 %v2106, %v1301
        %v2139 = vadd.f32 %v2107, %v1304
        %v2140 = vadd.f32 %v2108, %v1307
        %v2141 = vadd.f32 %v2109, %v1310
        %v2142 = vadd.f32 %v2110, %v1313
        %v2143 = vadd.f32 %v2111, %v1316
        %v2144 = vadd.f32 %v2112, %v1319
        %v2145 = vadd.f32 %v2113, %v1322
        %v2146 = vadd.f32 %v2114, %v1325
        %v2147 = vadd.f32 %v2115, %v1328
        %v2148 = vadd.f32 %v2116, %v1331
        %v2149 = vadd.f32 %v2117, %v1334
        %v2150 = vadd.f32 %v2118, %v1337
        %v2151 = vadd.f32 %v2119, %v1340
        %2152 = vst [vmem:[%s1991 + $0x1] sm:$0xff] %v2120
        %2153 = vst [vmem:[%s1991 + $0x9] sm:$0xff] %v2121
        %2154 = vst [vmem:[%s1991 + $0x19] sm:$0xff] %v2122
        %2155 = vst [vmem:[%s1991 + $0x21] sm:$0xff] %v2123
        %2156 = vst [vmem:[%s1991 + $0x31] sm:$0xff] %v2124
        %2157 = vst [vmem:[%s1991 + $0x39] sm:$0xff] %v2125
        %2158 = vst [vmem:[%s1991 + $0x49] sm:$0xff] %v2126
        %2159 = vst [vmem:[%s1991 + $0x51] sm:$0xff] %v2127
        %2160 = vst [vmem:[%s1991 + $0x61] sm:$0xff] %v2128
        %2161 = vst [vmem:[%s1991 + $0x69] sm:$0xff] %v2129
        %2162 = vst [vmem:[%s1991 + $0x79] sm:$0xff] %v2130
        %2163 = vst [vmem:[%s1991 + $0x81] sm:$0xff] %v2131
        %2164 = vst [vmem:[%s1991 + $0x91] sm:$0xff] %v2132
        %2165 = vst [vmem:[%s1991 + $0x99] sm:$0xff] %v2133
        %2166 = vst [vmem:[%s1991 + $0xa9] sm:$0xff] %v2134
        %2167 = vst [vmem:[%s1991 + $0xb1] sm:$0xff] %v2135
        %2168 = vst [vmem:[%s1991 + $0xc1] sm:$0xff] %v2136
        %2169 = vst [vmem:[%s1991 + $0xc9] sm:$0xff] %v2137
        %2170 = vst [vmem:[%s1991 + $0xd9] sm:$0xff] %v2138
        %2171 = vst [vmem:[%s1991 + $0xe1] sm:$0xff] %v2139
        %2172 = vst [vmem:[%s1991 + $0xf1] sm:$0xff] %v2140
        %2173 = vst [vmem:[%s1991 + $0xf9] sm:$0xff] %v2141
        %2174 = vst [vmem:[%s1991 + $0x109] sm:$0xff] %v2142
        %2175 = vst [vmem:[%s1991 + $0x111] sm:$0xff] %v2143
        %2176 = vst [vmem:[%s1991 + $0x121] sm:$0xff] %v2144
        %2177 = vst [vmem:[%s1991 + $0x129] sm:$0xff] %v2145
        %2178 = vst [vmem:[%s1991 + $0x139] sm:$0xff] %v2146
        %2179 = vst [vmem:[%s1991 + $0x141] sm:$0xff] %v2147
        %2180 = vst [vmem:[%s1991 + $0x151] sm:$0xff] %v2148
        %2181 = vst [vmem:[%s1991 + $0x159] sm:$0xff] %v2149
        %2182 = vst [vmem:[%s1991 + $0x169] sm:$0xff] %v2150
        %2183 = vst [vmem:[%s1991 + $0x171] sm:$0xff] %v2151
        %v2184 = vld [vmem:[%s1991 + $0x2] sm:$0xff]
        %v2185 = vld [vmem:[%s1991 + $0xa] sm:$0xff]
        %v2186 = vld [vmem:[%s1991 + $0x1a] sm:$0xff]
        %v2187 = vld [vmem:[%s1991 + $0x22] sm:$0xff]
        %v2188 = vld [vmem:[%s1991 + $0x32] sm:$0xff]
        %v2189 = vld [vmem:[%s1991 + $0x3a] sm:$0xff]
        %v2190 = vld [vmem:[%s1991 + $0x4a] sm:$0xff]
        %v2191 = vld [vmem:[%s1991 + $0x52] sm:$0xff]
        %v2192 = vld [vmem:[%s1991 + $0x62] sm:$0xff]
        %v2193 = vld [vmem:[%s1991 + $0x6a] sm:$0xff]
        %v2194 = vld [vmem:[%s1991 + $0x7a] sm:$0xff]
        %v2195 = vld [vmem:[%s1991 + $0x82] sm:$0xff]
        %v2196 = vld [vmem:[%s1991 + $0x92] sm:$0xff]
        %v2197 = vld [vmem:[%s1991 + $0x9a] sm:$0xff]
        %v2198 = vld [vmem:[%s1991 + $0xaa] sm:$0xff]
        %v2199 = vld [vmem:[%s1991 + $0xb2] sm:$0xff]
        %v2200 = vld [vmem:[%s1991 + $0xc2] sm:$0xff]
        %v2201 = vld [vmem:[%s1991 + $0xca] sm:$0xff]
        %v2202 = vld [vmem:[%s1991 + $0xda] sm:$0xff]
        %v2203 = vld [vmem:[%s1991 + $0xe2] sm:$0xff]
        %v2204 = vld [vmem:[%s1991 + $0xf2] sm:$0xff]
        %v2205 = vld [vmem:[%s1991 + $0xfa] sm:$0xff]
        %v2206 = vld [vmem:[%s1991 + $0x10a] sm:$0xff]
        %v2207 = vld [vmem:[%s1991 + $0x112] sm:$0xff]
        %v2208 = vld [vmem:[%s1991 + $0x122] sm:$0xff]
        %v2209 = vld [vmem:[%s1991 + $0x12a] sm:$0xff]
        %v2210 = vld [vmem:[%s1991 + $0x13a] sm:$0xff]
        %v2211 = vld [vmem:[%s1991 + $0x142] sm:$0xff]
        %v2212 = vld [vmem:[%s1991 + $0x152] sm:$0xff]
        %v2213 = vld [vmem:[%s1991 + $0x15a] sm:$0xff]
        %v2214 = vld [vmem:[%s1991 + $0x16a] sm:$0xff]
        %v2215 = vld [vmem:[%s1991 + $0x172] sm:$0xff]
        %v2216 = vadd.f32 %v2184, %v1360
        %v2217 = vadd.f32 %v2185, %v1363
        %v2218 = vadd.f32 %v2186, %v1366
        %v2219 = vadd.f32 %v2187, %v1369
        %v2220 = vadd.f32 %v2188, %v1372
        %v2221 = vadd.f32 %v2189, %v1375
        %v2222 = vadd.f32 %v2190, %v1378
        %v2223 = vadd.f32 %v2191, %v1381
        %v2224 = vadd.f32 %v2192, %v1384
        %v2225 = vadd.f32 %v2193, %v1387
        %v2226 = vadd.f32 %v2194, %v1390
        %v2227 = vadd.f32 %v2195, %v1393
        %v2228 = vadd.f32 %v2196, %v1396
        %v2229 = vadd.f32 %v2197, %v1399
        %v2230 = vadd.f32 %v2198, %v1402
        %v2231 = vadd.f32 %v2199, %v1405
        %v2232 = vadd.f32 %v2200, %v1408
        %v2233 = vadd.f32 %v2201, %v1411
        %v2234 = vadd.f32 %v2202, %v1414
        %v2235 = vadd.f32 %v2203, %v1417
        %v2236 = vadd.f32 %v2204, %v1420
        %v2237 = vadd.f32 %v2205, %v1423
        %v2238 = vadd.f32 %v2206, %v1426
        %v2239 = vadd.f32 %v2207, %v1429
        %v2240 = vadd.f32 %v2208, %v1432
        %v2241 = vadd.f32 %v2209, %v1435
        %v2242 = vadd.f32 %v2210, %v1438
        %v2243 = vadd.f32 %v2211, %v1441
        %v2244 = vadd.f32 %v2212, %v1444
        %v2245 = vadd.f32 %v2213, %v1447
        %v2246 = vadd.f32 %v2214, %v1450
        %v2247 = vadd.f32 %v2215, %v1453
        %2248 = vst [vmem:[%s1991 + $0x2] sm:$0xff] %v2216
        %2249 = vst [vmem:[%s1991 + $0xa] sm:$0xff] %v2217
        %2250 = vst [vmem:[%s1991 + $0x1a] sm:$0xff] %v2218
        %2251 = vst [vmem:[%s1991 + $0x22] sm:$0xff] %v2219
        %2252 = vst [vmem:[%s1991 + $0x32] sm:$0xff] %v2220
        %2253 = vst [vmem:[%s1991 + $0x3a] sm:$0xff] %v2221
        %2254 = vst [vmem:[%s1991 + $0x4a] sm:$0xff] %v2222
        %2255 = vst [vmem:[%s1991 + $0x52] sm:$0xff] %v2223
        %2256 = vst [vmem:[%s1991 + $0x62] sm:$0xff] %v2224
        %2257 = vst [vmem:[%s1991 + $0x6a] sm:$0xff] %v2225
        %2258 = vst [vmem:[%s1991 + $0x7a] sm:$0xff] %v2226
        %2259 = vst [vmem:[%s1991 + $0x82] sm:$0xff] %v2227
        %2260 = vst [vmem:[%s1991 + $0x92] sm:$0xff] %v2228
        %2261 = vst [vmem:[%s1991 + $0x9a] sm:$0xff] %v2229
        %2262 = vst [vmem:[%s1991 + $0xaa] sm:$0xff] %v2230
        %2263 = vst [vmem:[%s1991 + $0xb2] sm:$0xff] %v2231
        %2264 = vst [vmem:[%s1991 + $0xc2] sm:$0xff] %v2232
        %2265 = vst [vmem:[%s1991 + $0xca] sm:$0xff] %v2233
        %2266 = vst [vmem:[%s1991 + $0xda] sm:$0xff] %v2234
        %2267 = vst [vmem:[%s1991 + $0xe2] sm:$0xff] %v2235
        %2268 = vst [vmem:[%s1991 + $0xf2] sm:$0xff] %v2236
        %2269 = vst [vmem:[%s1991 + $0xfa] sm:$0xff] %v2237
        %2270 = vst [vmem:[%s1991 + $0x10a] sm:$0xff] %v2238
        %2271 = vst [vmem:[%s1991 + $0x112] sm:$0xff] %v2239
        %2272 = vst [vmem:[%s1991 + $0x122] sm:$0xff] %v2240
        %2273 = vst [vmem:[%s1991 + $0x12a] sm:$0xff] %v2241
        %2274 = vst [vmem:[%s1991 + $0x13a] sm:$0xff] %v2242
        %2275 = vst [vmem:[%s1991 + $0x142] sm:$0xff] %v2243
        %2276 = vst [vmem:[%s1991 + $0x152] sm:$0xff] %v2244
        %2277 = vst [vmem:[%s1991 + $0x15a] sm:$0xff] %v2245
        %2278 = vst [vmem:[%s1991 + $0x16a] sm:$0xff] %v2246
        %2279 = vst [vmem:[%s1991 + $0x172] sm:$0xff] %v2247
        %v2280 = vld [vmem:[%s1702 + $0x1] sm:$0xff]
        %v2281 = vld [vmem:[%s1702 + $0x9] sm:$0xff]
        %v2282 = vld [vmem:[%s1702 + $0x19] sm:$0xff]
        %v2283 = vld [vmem:[%s1702 + $0x21] sm:$0xff]
        %v2284 = vld [vmem:[%s1702 + $0x31] sm:$0xff]
        %v2285 = vld [vmem:[%s1702 + $0x39] sm:$0xff]
        %v2286 = vld [vmem:[%s1702 + $0x49] sm:$0xff]
        %v2287 = vld [vmem:[%s1702 + $0x51] sm:$0xff]
        %v2288 = vld [vmem:[%s1702 + $0x61] sm:$0xff]
        %v2289 = vld [vmem:[%s1702 + $0x69] sm:$0xff]
        %v2290 = vld [vmem:[%s1702 + $0x79] sm:$0xff]
        %v2291 = vld [vmem:[%s1702 + $0x81] sm:$0xff]
        %v2292 = vld [vmem:[%s1702 + $0x91] sm:$0xff]
        %v2293 = vld [vmem:[%s1702 + $0x99] sm:$0xff]
        %v2294 = vld [vmem:[%s1702 + $0xa9] sm:$0xff]
        %v2295 = vld [vmem:[%s1702 + $0xb1] sm:$0xff]
        %v2296 = vld [vmem:[%s1702 + $0xc1] sm:$0xff]
        %v2297 = vld [vmem:[%s1702 + $0xc9] sm:$0xff]
        %v2298 = vld [vmem:[%s1702 + $0xd9] sm:$0xff]
        %v2299 = vld [vmem:[%s1702 + $0xe1] sm:$0xff]
        %v2300 = vld [vmem:[%s1702 + $0xf1] sm:$0xff]
        %v2301 = vld [vmem:[%s1702 + $0xf9] sm:$0xff]
        %v2302 = vld [vmem:[%s1702 + $0x109] sm:$0xff]
        %v2303 = vld [vmem:[%s1702 + $0x111] sm:$0xff]
        %v2304 = vld [vmem:[%s1702 + $0x121] sm:$0xff]
        %v2305 = vld [vmem:[%s1702 + $0x129] sm:$0xff]
        %v2306 = vld [vmem:[%s1702 + $0x139] sm:$0xff]
        %v2307 = vld [vmem:[%s1702 + $0x141] sm:$0xff]
        %v2308 = vld [vmem:[%s1702 + $0x151] sm:$0xff]
        %v2309 = vld [vmem:[%s1702 + $0x159] sm:$0xff]
        %v2310 = vld [vmem:[%s1702 + $0x169] sm:$0xff]
        %v2311 = vld [vmem:[%s1702 + $0x171] sm:$0xff]
        %2312 = vst [vmem:[%s190] sm:$0xff] %v2280
        %2313 = vst [vmem:[%s190 + $0x8] sm:$0xff] %v2281
        %2314 = vst [vmem:[%s190 + $0x10] sm:$0xff] %v2282
        %2315 = vst [vmem:[%s190 + $0x18] sm:$0xff] %v2283
        %2316 = vst [vmem:[%s190 + $0x20] sm:$0xff] %v2284
        %2317 = vst [vmem:[%s190 + $0x28] sm:$0xff] %v2285
        %2318 = vst [vmem:[%s190 + $0x30] sm:$0xff] %v2286
        %2319 = vst [vmem:[%s190 + $0x38] sm:$0xff] %v2287
        %2320 = vst [vmem:[%s190 + $0x40] sm:$0xff] %v2288
        %2321 = vst [vmem:[%s190 + $0x48] sm:$0xff] %v2289
        %2322 = vst [vmem:[%s190 + $0x50] sm:$0xff] %v2290
        %2323 = vst [vmem:[%s190 + $0x58] sm:$0xff] %v2291
        %2324 = vst [vmem:[%s190 + $0x60] sm:$0xff] %v2292
        %2325 = vst [vmem:[%s190 + $0x68] sm:$0xff] %v2293
        %2326 = vst [vmem:[%s190 + $0x70] sm:$0xff] %v2294
        %2327 = vst [vmem:[%s190 + $0x78] sm:$0xff] %v2295
        %2328 = vst [vmem:[%s190 + $0x80] sm:$0xff] %v2296
        %2329 = vst [vmem:[%s190 + $0x88] sm:$0xff] %v2297
        %2330 = vst [vmem:[%s190 + $0x90] sm:$0xff] %v2298
        %2331 = vst [vmem:[%s190 + $0x98] sm:$0xff] %v2299
        %2332 = vst [vmem:[%s190 + $0xa0] sm:$0xff] %v2300
        %2333 = vst [vmem:[%s190 + $0xa8] sm:$0xff] %v2301
        %2334 = vst [vmem:[%s190 + $0xb0] sm:$0xff] %v2302
        %2335 = vst [vmem:[%s190 + $0xb8] sm:$0xff] %v2303
        %2336 = vst [vmem:[%s190 + $0xc0] sm:$0xff] %v2304
        %2337 = vst [vmem:[%s190 + $0xc8] sm:$0xff] %v2305
        %2338 = vst [vmem:[%s190 + $0xd0] sm:$0xff] %v2306
        %2339 = vst [vmem:[%s190 + $0xd8] sm:$0xff] %v2307
        %2340 = vst [vmem:[%s190 + $0xe0] sm:$0xff] %v2308
        %2341 = vst [vmem:[%s190 + $0xe8] sm:$0xff] %v2309
        %2342 = vst [vmem:[%s190 + $0xf0] sm:$0xff] %v2310
        %2343 = vst [vmem:[%s190 + $0xf8] sm:$0xff] %v2311
        %s2344 = sand.u32 %s115, 1
        %s2345 = scalar_lea.sflag [#allocation4], %s2344
        %s2346 = sand.u32 %s115, 1
        %s2347 = smul.addr %s2346, 256
        %s2348 = scalar_lea.vmem [#allocation3], %s2347
        // Predicated region
        $region37: #{tpu_custom_call.1} parent=35 // pred_check
          %p2349 = pneg %p125
        $region38: #{tpu_custom_call.1} parent=35 // pred_check_branch
          %2351 = sbr.rel (%p2349) target = $region40
        $region39: #{tpu_custom_call.1} parent=35 // pred_region
          %2353 = vsyncadd %s2345, 0
          %s2354 = smul.addr %s18, 32
          %s2355 = smul.addr %s2354, 8
          %s2356 = scalar_lea.hbm %s4, %s2355
          %s2357 = sshll.u32 %s2348, 4
          %s2358 = int_to_ptr.vmem [resolvable:$true] %s2357
          %s2359 = sshll.u32 %s2356, 4
          %s2360 = int_to_ptr.hbm [resolvable:$true] %s2359
          %2365 = dma.vmem_to_hbm [thread:$0]  %s2358, 4096, %s2360, %s2345, 128, 128, 8
        $region40: #{tpu_custom_call.1} parent=35 // pred_fallthru
          _
      $region36: #{tpu_custom_call.1} parent=5 // pred_fallthru
        _
      %p2366 = scmp.le.s32.totalorder 2, %s13
      // Predicated region
      $region41: #{tpu_custom_call.1} parent=5 // pred_check
        %p2367 = pneg %p2366
      $region42: #{tpu_custom_call.1} parent=5 // pred_check_branch
        %2369 = sbr.rel (%p2367) target = $region44
      $region43: #{tpu_custom_call.1} parent=5 // pred_region
        %s2370 = ssub.s32 %s13, 2
        // Predicated region
        $region45: #{tpu_custom_call.1} parent=43 // pred_check
          %p2371 = pneg %p131
        $region46: #{tpu_custom_call.1} parent=43 // pred_check_branch
          %2373 = sbr.rel (%p2371) target = $region48
        $region47: #{tpu_custom_call.1} parent=43 // pred_region
          %s2374 = sand.u32 %s116, 1
          %s2375 = scalar_lea.sflag [#allocation4], %s2374
          %s2376 = sand.u32 %s116, 1
          %s2377 = smul.addr %s2376, 256
          %s2378 = scalar_lea.vmem [#allocation3], %s2377
          %2380 = dma.done %s2375, 4096
        $region48: #{tpu_custom_call.1} parent=43 // pred_fallthru
          _
      $region44: #{tpu_custom_call.1} parent=5 // pred_fallthru
        _
    $region6: #{tpu_custom_call.1} parent=1 // loop_footer
      %s17 = sadd.s32 1, %s13
    $region7: #{tpu_custom_call.1} parent=1 // loop_footer_branch
      %12 = sbr.rel target = $region3
    $region8: #{tpu_custom_call.1} parent=1 // loop_exit
      _
    %2381 = vsyncpa [#allocation4], 1
    %s2382 = scalar_lea.sflag [#allocation4], 1
    %2383 = vsyncpa %s2382, 1

</llo_original>
